<compile_context>
chip_gen: v7x
topology: tpu7x:2x2x1
jax: 0.10.0
libtpu: 0.0.40
codegen_flags: <defaults>
</compile_context>

<pallas_src>
import functools

import jax
import jax.numpy as jnp
from jax.experimental import pallas as pl
from jax.experimental.pallas import tpu as pltpu


def _group_norm_kernel(x_ref, o_ref, *, indices):
    # Block shape: (C, T) — batch dim squeezed; all channels on sublanes.
    x = x_ref[...].astype(jnp.float32)                     # (C, T)
    c = x.shape[0]
    g = len(indices)
    hi = jax.lax.Precision.HIGHEST                         # full-f32 MXU passes

    # --- Static group matrices, built from iota (no captured constants). ----
    # group id of a channel = number of group boundaries <= channel index
    ch_gc = jax.lax.broadcasted_iota(jnp.int32, (g, c), dimension=1)
    ch_cg = jax.lax.broadcasted_iota(jnp.int32, (c, g), dimension=0)
    gid_gc = jnp.zeros((g, c), jnp.int32)
    gid_cg = jnp.zeros((c, g), jnp.int32)
    for e in indices[:-1]:                                 # static Python unroll
        gid_gc = gid_gc + (ch_gc >= e).astype(jnp.int32)
        gid_cg = gid_cg + (ch_cg >= e).astype(jnp.int32)
    grp_gc = jax.lax.broadcasted_iota(jnp.int32, (g, c), dimension=0)
    grp_cg = jax.lax.broadcasted_iota(jnp.int32, (c, g), dimension=1)
    a_gather = (gid_gc == grp_gc).astype(jnp.float32)      # (G, C) one-hot rows
    a_scatter = (gid_cg == grp_cg).astype(jnp.float32)     # (C, G) one-hot cols

    # Per-group 1/n and 1/(n-1) column vectors (exact scalar constants).
    g_col = jax.lax.broadcasted_iota(jnp.int32, (g, 1), dimension=0)
    inv_n = jnp.zeros((g, 1), jnp.float32)
    inv_nm1 = jnp.zeros((g, 1), jnp.float32)
    start = 0
    for gi, end in enumerate(indices):                     # static Python unroll
        n = end - start
        inv_n = jnp.where(g_col == gi, jnp.float32(1.0 / n), inv_n)
        # unbiased (n-1) divisor like torch.std; n == 1 -> NaN, matching torch
        nm1 = jnp.float32(1.0 / (n - 1)) if n > 1 else jnp.float32(jnp.nan)
        inv_nm1 = jnp.where(g_col == gi, nm1, inv_nm1)
        start = end

    # --- Segment stats on the MXU; VALU work is O(1) per element. -----------
    gsum = jnp.dot(a_gather, x, preferred_element_type=jnp.float32,
                   precision=hi)                           # (G, T)
    gmean = gsum * inv_n                                   # (G, T)
    mean_c = jnp.dot(a_scatter, gmean, preferred_element_type=jnp.float32,
                     precision=hi)                         # (C, T) per-channel mean
    centered = x - mean_c                                  # reused for out

    gss = jnp.dot(a_gather, centered * centered,
                  preferred_element_type=jnp.float32, precision=hi)   # (G, T)
    gstd = jnp.sqrt(gss * inv_nm1) + jnp.float32(1e-5)
    # exact reciprocal: only touches the (G, T) stats, cost is noise
    inv_std_g = pl.reciprocal(gstd, approx=False)
    inv_std_c = jnp.dot(a_scatter, inv_std_g,
                        preferred_element_type=jnp.float32, precision=hi)  # (C, T)

    # Single full-block, lane/sublane-aligned store.
    o_ref[...] = (centered * inv_std_c).astype(o_ref.dtype)


def _pick_lane_tile(batch, channels, hw, itemsize, lane_tile=None):
    """Lane-tile size: <= 1024 lanes, multiple of 128, VMEM-safe, deep grid."""
    if hw <= 128:
        return hw                                  # single full-extent block
    t_cap = 1024                                   # roofline saturates ~512-1024
    if lane_tile is not None:
        t_cap = max(128, (int(lane_tile) // 128) * 128)
    # VMEM fit: double-buffered in+out blocks + ~5 live f32 working copies.
    bytes_per_lane = channels * (4 * itemsize + 5 * 4)
    fit = max(128, ((32 << 20) // bytes_per_lane // 128) * 128)  # v7x-safe budget
    t_cap = min(t_cap, fit)

    lanes = -(-hw // 128)                          # number of 128-lane chunks
    cap_chunks = max(1, t_cap // 128)
    n_tiles = -(-lanes // cap_chunks)              # min tiles at the cap
    # Keep the grid deep enough for DMA/compute overlap and both v7x cores.
    target_steps = 8
    if batch * n_tiles < target_steps:
        n_tiles = min(lanes, max(n_tiles, -(-target_steps // batch)))
    chunks = -(-lanes // n_tiles)
    return chunks * 128


def custom_group_norm(x, indices, lane_tile=None):
    """x: (B, C, H, W) NCHW like the PyTorch module. `indices` are static group ends."""
    B, C, H, W = x.shape
    indices = tuple(int(i) for i in indices)
    assert indices[-1] == C, "last group boundary must equal channel count"
    assert all(e > s for s, e in zip((0,) + indices[:-1], indices)), \
        "group boundaries must be strictly increasing"

    HW = H * W
    G = len(indices)
    itemsize = jnp.dtype(x.dtype).itemsize

    T = _pick_lane_tile(B, C, HW, itemsize, lane_tile)
    n_tiles = pl.cdiv(HW, T)                       # ragged trailing block is fine
    grid = (B, n_tiles)

    # VMEM limit = actual need + headroom (double-buffered in/out blocks,
    # ~5 f32 working copies, per-group stats), capped for v7x's 64 MiB VMEM.
    vmem_need = 4 * C * T * itemsize + 5 * C * T * 4 + 8 * G * T * 4
    vmem_limit = int(min(max(vmem_need + (8 << 20), 16 << 20), 48 << 20))

    x2 = x.reshape(B, C, HW)                       # contiguous: no HBM copy

    kernel = functools.partial(_group_norm_kernel, indices=indices)

    cost = pl.CostEstimate(
        flops=int(8 * B * C * HW),                 # group-count independent
        transcendentals=int(2 * G * B * HW),       # sqrt + reciprocal on stats
        bytes_accessed=int(2 * B * C * HW * itemsize),
    )

    out = pl.pallas_call(
        kernel,
        out_shape=jax.ShapeDtypeStruct((B, C, HW), x.dtype),
        grid_spec=pltpu.PrefetchScalarGridSpec(
            num_scalar_prefetch=0,
            grid=grid,
            in_specs=[pl.BlockSpec((None, C, T), lambda b, s: (b, 0, s))],
            out_specs=pl.BlockSpec((None, C, T), lambda b, s: (b, 0, s)),
        ),
        compiler_params=pltpu.CompilerParams(
            dimension_semantics=("parallel", "parallel"),
            vmem_limit_bytes=vmem_limit,
        ),
        cost_estimate=cost,
    )(x2)

    return out.reshape(B, C, H, W)                 # contiguous: no HBM copy


def _reference(x, indices):
    """Pure-JAX reference mirroring the PyTorch forward (unbiased std)."""
    outs = []
    start = 0
    for end in indices:
        g = x[:, start:end]
        mean = jnp.mean(g, axis=1, keepdims=True)
        std = jnp.std(g, axis=1, keepdims=True, ddof=1) + 1e-5
        outs.append((g - mean) / std)
        start = end
    return jnp.concatenate(outs, axis=1)


if __name__ == "__main__":
    key = jax.random.PRNGKey(0)
    B, C, H, W = 2, 8, 16, 16
    indices = (3, 8)  # two channel groups: [0:3) and [3:8)

    x = jax.random.normal(key, (B, C, H, W), dtype=jnp.float32)

    y = custom_group_norm(x, indices)
    y = jax.block_until_ready(y)

    y_ref = _reference(x, indices)
    assert y.shape == x.shape
    assert jnp.allclose(y, y_ref, atol=2e-5, rtol=2e-5), "mismatch vs reference"

    print("KERNEL_OK")
</pallas_src>

<mosaic_0001>
module attributes {stable_mosaic.version = 11 : i64} {
  func.func @_group_norm_kernel(%arg0: i32, %arg1: i32, %arg2: memref<1x8x128xf32, #tpu.memory_space<vmem>>, %arg3: memref<1x8x128xf32, #tpu.memory_space<vmem>>) attributes {dimension_semantics = [#tpu.dimension_semantics<parallel>, #tpu.dimension_semantics<parallel>], iteration_bounds = array<i64: 2, 2>, scalar_prefetch = 0 : i64, scratch_operands = 0 : i64, tpu.core_type = #tpu.core_type<tc>, window_params = [{transform_indices = @transform_0, window_bounds = array<i64: 1, 8, 128>}, {transform_indices = @transform_1, window_bounds = array<i64: 1, 8, 128>}]} {
    %c0 = arith.constant 0 : index
    %c0_0 = arith.constant 0 : index
    %c0_1 = arith.constant 0 : index
    %0 = vector.load %arg2[%c0, %c0_0, %c0_1] : memref<1x8x128xf32, #tpu.memory_space<vmem>>, vector<1x8x128xf32>
    %1 = vector.shape_cast %0 : vector<1x8x128xf32> to vector<8x128xf32>
    %2 = tpu.iota {dimensions = array<i32: 1>} : vector<2x8xi32>
    %3 = tpu.iota {dimensions = array<i32: 0>} : vector<8x2xi32>
    %c0_i32 = arith.constant 0 : i32
    %4 = vector.broadcast %c0_i32 : i32 to vector<2x8xi32>
    %c0_i32_2 = arith.constant 0 : i32
    %5 = vector.broadcast %c0_i32_2 : i32 to vector<8x2xi32>
    %c3_i32 = arith.constant 3 : i32
    %6 = vector.broadcast %c3_i32 : i32 to vector<2x8xi32>
    %7 = arith.cmpi sge, %2, %6 : vector<2x8xi32>
    %8 = arith.extui %7 : vector<2x8xi1> to vector<2x8xi32>
    %9 = arith.addi %4, %8 : vector<2x8xi32>
    %c3_i32_3 = arith.constant 3 : i32
    %10 = vector.broadcast %c3_i32_3 : i32 to vector<8x2xi32>
    %11 = arith.cmpi sge, %3, %10 : vector<8x2xi32>
    %12 = arith.extui %11 : vector<8x2xi1> to vector<8x2xi32>
    %13 = arith.addi %5, %12 : vector<8x2xi32>
    %14 = tpu.iota {dimensions = array<i32: 0>} : vector<2x8xi32>
    %15 = tpu.iota {dimensions = array<i32: 1>} : vector<8x2xi32>
    %16 = arith.cmpi eq, %9, %14 : vector<2x8xi32>
    %17 = arith.extui %16 : vector<2x8xi1> to vector<2x8xi32>
    %18 = arith.sitofp %17 : vector<2x8xi32> to vector<2x8xf32>
    %19 = arith.cmpi eq, %13, %15 : vector<8x2xi32>
    %20 = arith.extui %19 : vector<8x2xi1> to vector<8x2xi32>
    %21 = arith.sitofp %20 : vector<8x2xi32> to vector<8x2xf32>
    %22 = tpu.iota {dimensions = array<i32: 0>} : vector<2x1xi32>
    %cst = arith.constant 0.000000e+00 : f32
    %23 = vector.broadcast %cst : f32 to vector<2x1xf32>
    %cst_4 = arith.constant 0.000000e+00 : f32
    %24 = vector.broadcast %cst_4 : f32 to vector<2x1xf32>
    %c0_i32_5 = arith.constant 0 : i32
    %25 = vector.broadcast %c0_i32_5 : i32 to vector<2x1xi32>
    %26 = arith.cmpi eq, %22, %25 : vector<2x1xi32>
    %cst_6 = arith.constant 0.333333343 : f32
    %27 = vector.broadcast %cst_6 : f32 to vector<2x1xf32>
    %28 = arith.select %26, %27, %23 : vector<2x1xi1>, vector<2x1xf32>
    %c0_i32_7 = arith.constant 0 : i32
    %29 = vector.broadcast %c0_i32_7 : i32 to vector<2x1xi32>
    %30 = arith.cmpi eq, %22, %29 : vector<2x1xi32>
    %cst_8 = arith.constant 5.000000e-01 : f32
    %31 = vector.broadcast %cst_8 : f32 to vector<2x1xf32>
    %32 = arith.select %30, %31, %24 : vector<2x1xi1>, vector<2x1xf32>
    %c1_i32 = arith.constant 1 : i32
    %33 = vector.broadcast %c1_i32 : i32 to vector<2x1xi32>
    %34 = arith.cmpi eq, %22, %33 : vector<2x1xi32>
    %cst_9 = arith.constant 2.000000e-01 : f32
    %35 = vector.broadcast %cst_9 : f32 to vector<2x1xf32>
    %36 = arith.select %34, %35, %28 : vector<2x1xi1>, vector<2x1xf32>
    %c1_i32_10 = arith.constant 1 : i32
    %37 = vector.broadcast %c1_i32_10 : i32 to vector<2x1xi32>
    %38 = arith.cmpi eq, %22, %37 : vector<2x1xi32>
    %cst_11 = arith.constant 2.500000e-01 : f32
    %39 = vector.broadcast %cst_11 : f32 to vector<2x1xf32>
    %40 = arith.select %38, %39, %32 : vector<2x1xi1>, vector<2x1xf32>
    %cst_12 = arith.constant dense<0.000000e+00> : vector<2x128xf32>
    %41 = tpu.matmul %18, %1, %cst_12 {dimension_numbers = #tpu.dot_dimension_numbers<[1], [0], [0], [1], [0, 0, 1, 1], [], []>, precision = #tpu.contract_precision<fp32>} : vector<2x8xf32>, vector<8x128xf32>, vector<2x128xf32> -> vector<2x128xf32>
    %42 = vector.broadcast %36 : vector<2x1xf32> to vector<2x128xf32>
    %43 = arith.mulf %41, %42 : vector<2x128xf32>
    %cst_13 = arith.constant dense<0.000000e+00> : vector<8x128xf32>
    %44 = tpu.matmul %21, %43, %cst_13 {dimension_numbers = #tpu.dot_dimension_numbers<[1], [0], [0], [1], [0, 0, 1, 1], [], []>, precision = #tpu.contract_precision<fp32>} : vector<8x2xf32>, vector<2x128xf32>, vector<8x128xf32> -> vector<8x128xf32>
    %45 = arith.subf %1, %44 : vector<8x128xf32>
    %46 = arith.mulf %45, %45 : vector<8x128xf32>
    %cst_14 = arith.constant dense<0.000000e+00> : vector<2x128xf32>
    %47 = tpu.matmul %18, %46, %cst_14 {dimension_numbers = #tpu.dot_dimension_numbers<[1], [0], [0], [1], [0, 0, 1, 1], [], []>, precision = #tpu.contract_precision<fp32>} : vector<2x8xf32>, vector<8x128xf32>, vector<2x128xf32> -> vector<2x128xf32>
    %48 = vector.broadcast %40 : vector<2x1xf32> to vector<2x128xf32>
    %49 = arith.mulf %47, %48 : vector<2x128xf32>
    %50 = math.sqrt %49 : vector<2x128xf32>
    %cst_15 = arith.constant 9.99999974E-6 : f32
    %51 = vector.broadcast %cst_15 : f32 to vector<2x128xf32>
    %52 = arith.addf %50, %51 : vector<2x128xf32>
    %53 = tpu.reciprocal %52 : vector<2x128xf32> -> vector<2x128xf32>
    %cst_16 = arith.constant dense<0.000000e+00> : vector<8x128xf32>
    %54 = tpu.matmul %21, %53, %cst_16 {dimension_numbers = #tpu.dot_dimension_numbers<[1], [0], [0], [1], [0, 0, 1, 1], [], []>, precision = #tpu.contract_precision<fp32>} : vector<8x2xf32>, vector<2x128xf32>, vector<8x128xf32> -> vector<8x128xf32>
    %55 = arith.mulf %45, %54 : vector<8x128xf32>
    %c0_17 = arith.constant 0 : index
    %c0_18 = arith.constant 0 : index
    %c0_19 = arith.constant 0 : index
    %56 = vector.load %arg3[%c0_17, %c0_18, %c0_19] : memref<1x8x128xf32, #tpu.memory_space<vmem>>, vector<1x8x128xf32>
    %57 = vector.shape_cast %56 : vector<1x8x128xf32> to vector<8x128xf32>
    %58 = vector.shape_cast %55 : vector<8x128xf32> to vector<1x8x128xf32>
    tpu.vector_store %arg3[%c0_17, %c0_18, %c0_19], %58 {strides = array<i32>} : memref<1x8x128xf32, #tpu.memory_space<vmem>>, vector<1x8x128xf32>,
    return
  }
  func.func @transform_0(%arg0: i32, %arg1: i32) -> (i32, i32, i32) {
    %c0_i32 = arith.constant 0 : i32
    %c0_i32_0 = arith.constant 0 : i32
    return %arg0, %c0_i32, %arg1 : i32, i32, i32
  }
  func.func @transform_1(%arg0: i32, %arg1: i32) -> (i32, i32, i32) {
    %c0_i32 = arith.constant 0 : i32
    %c0_i32_0 = arith.constant 0 : i32
    return %arg0, %c0_i32, %arg1 : i32, i32, i32
  }
}

</mosaic_0001>

<llo_original>
// kernel: tpu_custom_call.1
$region0: #{tpu_custom_call.1}
  #allocation0 [shape = 'u32[]', space=smem, size = 0x4, offset = 0x4, fixed_abs, tag = 'smem constant byte address 0x4 - core index']
  #allocation1 [shape = 'u32[144,128]{1,0:T(1,128)}', space=vmem, size = 0x12000, scoped, tag = 'internal scratch']
  %s0 = inlined_call_operand.hbm [shape: f32[2,8,256], index: 0, kind: input, shape index: {}]
  %s1 = inlined_call_operand.hbm [shape: f32[2,8,256], index: 1, kind: output, shape index: {}]
  %s2 = sld [smem:[#allocation0]]
  $region41: #{tpu_custom_call.1} parent=0
    _
  %s4 = ssub.s32 1, %s2
  %s5 = scalar_select 0, %s4, %s2
  $region1: #{tpu_custom_call.1} parent=0
    #allocation2 [shape = 'u8[8192]{0}', space=vmem, size = 0x2000, scoped, tag = 'input window, operand 0']
    #allocation3 [shape = 's32[2]{0}', space=sflag, size = 0x8, scoped, tag = 'scoped memory for tpu_custom_call.1']
    #allocation4 [shape = 's32[2]{0}', space=sflag, size = 0x8, scoped, tag = 'scoped memory for tpu_custom_call.1']
    #allocation5 [shape = 'u8[8192]{0}', space=vmem, size = 0x2000, scoped, tag = 'output window, operand 0']
    %6 = vsyncpa [#allocation3], 0
    %s7 = scalar_lea.sflag [#allocation3], 1
    %8 = vsyncpa %s7, 0
    %9 = vsyncpa [#allocation4], 0
    %s10 = scalar_lea.sflag [#allocation4], 1
    %11 = vsyncpa %s10, 0
    loop: start=0, step=1, limit=6
    $region2: #{tpu_custom_call.1} parent=1 // loop_pre_header
      _
    $region3: #{tpu_custom_call.1} parent=1 // loop_header
      %s13 = sphi 0, %s17
      %p14 = scmp.ge.s32.totalorder %s13, 6
      %s20 = sphi 0, %s32
      %s21 = sphi 0, %s28
      %s22 = sphi 0, %s20
      %s23 = sphi 0, %s21
      %s24 = sphi 0, %s22
      %s25 = sphi 0, %s23
      %s37 = sphi 0, %s39
      %s40 = sphi 0, %s37
      %s41 = sphi 0, %s40
      %s57 = sphi 0, %s41
      %s65 = sphi 0, %s67
      %s68 = sphi 0, %s65
      %s69 = sphi 0, %s68
      %s85 = sphi 0, %s69
    $region4: #{tpu_custom_call.1} parent=1 // loop_header_branch
      %16 = sbr.rel (%p14) target = $region8
    $region5: #{tpu_custom_call.1} parent=1 // loop_body
      %s18 = ssub.s32 %s13, 1
      %s19 = ssub.s32 %s13, 2
      %s26 = sadd.s32 1, %s21
      %p27 = scmp.ge.s32.totalorder %s26, 2
      %s28 = scalar_select %p27, 0, %s26
      %s29 = sadd.s32 1, %s20
      %s30 = scalar_select %p27, %s29, %s20
      %p31 = scmp.ge.s32.totalorder %s30, 2
      %s32 = scalar_select %p31, 0, %s30
      %s33 = ssub.s32 %s20, %s32
      %s34 = ssub.s32 %s21, %s28
      %s35 = sor.u32 %s33, %s34
      %p36 = scmp.eq.s32.totalorder %s35, 0
      %s38 = sadd.s32 %s37, 1
      %s39 = scalar_select %p36, %s37, %s38
      %p42 = pneg %p36
      %p43 = scmp.eq.s32.totalorder %s13, 3
      %p44 = por %p42, %p43
      %p45 = scmp.ne.s32.totalorder %s37, %s40
      %p46 = scmp.eq.s32.totalorder %s13, 0
      %p47 = por %p45, %p46
      %p48 = scmp.ne.s32.totalorder %s37, %s40
      %p49 = scmp.eq.s32.totalorder %s18, 3
      %p50 = por %p48, %p49
      %p51 = scmp.ne.s32.totalorder %s40, %s41
      %p52 = scmp.eq.s32.totalorder %s18, 0
      %p53 = por %p51, %p52
      %p54 = scmp.ne.s32.totalorder %s40, %s41
      %p55 = scmp.eq.s32.totalorder %s19, 3
      %p56 = por %p54, %p55
      %p58 = scmp.ne.s32.totalorder %s41, %s57
      %p59 = scmp.eq.s32.totalorder %s19, 0
      %p60 = por %p58, %p59
      %s61 = ssub.s32 %s20, %s32
      %s62 = ssub.s32 %s21, %s28
      %s63 = sor.u32 %s61, %s62
      %p64 = scmp.eq.s32.totalorder %s63, 0
      %s66 = sadd.s32 %s65, 1
      %s67 = scalar_select %p64, %s65, %s66
      %p70 = pneg %p64
      %p71 = scmp.eq.s32.totalorder %s13, 3
      %p72 = por %p70, %p71
      %p73 = scmp.ne.s32.totalorder %s65, %s68
      %p74 = scmp.eq.s32.totalorder %s13, 0
      %p75 = por %p73, %p74
      %p76 = scmp.ne.s32.totalorder %s65, %s68
      %p77 = scmp.eq.s32.totalorder %s18, 3
      %p78 = por %p76, %p77
      %p79 = scmp.ne.s32.totalorder %s68, %s69
      %p80 = scmp.eq.s32.totalorder %s18, 0
      %p81 = por %p79, %p80
      %p82 = scmp.ne.s32.totalorder %s68, %s69
      %p83 = scmp.eq.s32.totalorder %s19, 3
      %p84 = por %p82, %p83
      %p86 = scmp.ne.s32.totalorder %s69, %s85
      %p87 = scmp.eq.s32.totalorder %s19, 0
      %p88 = por %p86, %p87
      %p89 = scmp.le.s32.totalorder 1, %s13
      %p90 = scmp.lt.s32.totalorder %s13, 5
      %p91 = pnand %p89, %p90
      %p92 = pneg %p91
      // Predicated region
      $region9: #{tpu_custom_call.1} parent=5 // pred_check
        _
      $region10: #{tpu_custom_call.1} parent=5 // pred_check_branch
        %94 = sbr.rel (%p91) target = $region12
      $region11: #{tpu_custom_call.1} parent=5 // pred_region
        %s95 = ssub.s32 %s13, 1
      $region12: #{tpu_custom_call.1} parent=5 // pred_fallthru
        _
      %p96 = scmp.lt.s32.totalorder %s13, 4
      // Predicated region
      $region13: #{tpu_custom_call.1} parent=5 // pred_check
        %p97 = pneg %p96
      $region14: #{tpu_custom_call.1} parent=5 // pred_check_branch
        %99 = sbr.rel (%p97) target = $region16
      $region15: #{tpu_custom_call.1} parent=5 // pred_region
        // Predicated region
        $region17: #{tpu_custom_call.1} parent=15 // pred_check
          %p100 = pneg %p47
        $region18: #{tpu_custom_call.1} parent=15 // pred_check_branch
          %102 = sbr.rel (%p100) target = $region20
        $region19: #{tpu_custom_call.1} parent=15 // pred_region
          %s103 = sand.u32 %s37, 1
          %s104 = scalar_lea.sflag [#allocation3], %s103
          %s105 = sand.u32 %s37, 1
          %s106 = smul.addr %s105, 8
          %s107 = scalar_lea.vmem [#allocation2], %s106
          %s109 = ssub.s32 128, 128
          %110 = vsyncadd %s104, %s109
          %s111 = smul.addr %s20, 2
          %s112 = sadd.s32 %s21, %s111
          %s113 = smul.addr %s112, 128
          %s114 = scalar_lea.hbm %s0, %s113
          %s116 = sshll.u32 %s107, 4
          %s117 = int_to_ptr.vmem [resolvable:$true] %s116
          %119 = dma.hbm_to_vmem [thread:$0]  %s114, 128, %s117, %s104
        $region20: #{tpu_custom_call.1} parent=15 // pred_fallthru
          _
      $region16: #{tpu_custom_call.1} parent=5 // pred_fallthru
        _
      %p120 = scmp.le.s32.totalorder 1, %s13
      %p121 = scmp.lt.s32.totalorder %s13, 5
      %p122 = pnand %p120, %p121
      %p123 = pneg %p122
      // Predicated region
      $region21: #{tpu_custom_call.1} parent=5 // pred_check
        _
      $region22: #{tpu_custom_call.1} parent=5 // pred_check_branch
        %125 = sbr.rel (%p122) target = $region24
      $region23: #{tpu_custom_call.1} parent=5 // pred_region
        %s126 = ssub.s32 %s13, 1
        %s127 = sand.u32 %s40, 1
        %s128 = scalar_lea.sflag [#allocation3], %s127
        %s129 = sand.u32 %s40, 1
        %s130 = smul.addr %s129, 8
        %s131 = scalar_lea.vmem [#allocation2], %s130
        // Predicated region
        $region25: #{tpu_custom_call.1} parent=23 // pred_check
          %p132 = pneg %p53
        $region26: #{tpu_custom_call.1} parent=23 // pred_check_branch
          %134 = sbr.rel (%p132) target = $region28
        $region27: #{tpu_custom_call.1} parent=23 // pred_region
          %135 = dma.done %s128, 128
        $region28: #{tpu_custom_call.1} parent=23 // pred_fallthru
          _
        %s136 = sand.u32 %s40, 1
        %s137 = scalar_lea.sflag [#allocation3], %s136
        %s138 = sand.u32 %s40, 1
        %s139 = smul.addr %s138, 8
        %s140 = scalar_lea.vmem [#allocation2], %s139
        %p141 = pneg %p53
        %p142 = pneg %p50
        %p143 = pneg %p81
        %p144 = pneg %p78
        %s145 = sand.u32 %s68, 1
        %s146 = scalar_lea.sflag [#allocation4], %s145
        %s147 = sand.u32 %s68, 1
        %s148 = smul.addr %s147, 8
        %s149 = scalar_lea.vmem [#allocation5], %s148
        %v150 = vld [vmem:[%s131] sm:$0xff]
        %v151 = vlaneseq
        %v152 = vand.u32 %v151, 127
        %v153 = vlaneseq
        %v154 = vshrl.u32 %v153, 7
        %vm155 = vcmp.ge.s32.totalorder %v152, 3
        %v156 = vsel %vm155, 1, 0
        %vm157 = vcmp.ge.s32.totalorder %v154, 3
        %v158 = vsel %vm157, 1, 0
        %vm159 = vcmp.eq.s32.totalorder %v156, %v154
        %v160 = vsel %vm159, 1, 0
        %v161 = vcvt.s32.f32 %v160
        %vm162 = vcmp.eq.s32.totalorder %v158, %v152
        %v163 = vsel %vm162, 1, 0
        %v164 = vcvt.s32.f32 %v163
        %vm165 = vcmp.eq.s32.totalorder %v154, 0
        %v166 = vsel %vm165, 0.33333334, 0.0
        %v167 = vsel %vm165, 0.5, 0.0
        %vm168 = vcmp.eq.s32.totalorder %v154, 1
        %v169 = vsel %vm168, 0.2, %v166
        %v170 = vsel %vm168, 0.25, %v167
        %vm171 = vcmask 64512
        %v173 = vsel %vm171, %v161, 0
        %175 = vmatprep.subr.mxu0 0.0
        %v176 = vand.u32 %v150, 4294901760
        %177 = vmatpush1.msra.mxu0 %v176
        %178 = vmatprep.subr.mxu0 0.0
        %179 = vmatpush1.msra.mxu0 0.0
        %180 = vmatprep.subr.mxu0 0.0
        %181 = vmatpush1.msra.mxu0 0.0
        %182 = vmatprep.subr.mxu0 0.0
        %183 = vmatpush1.msra.mxu0 0.0
        %184 = vmatprep.subr.mxu0 0.0
        %185 = vmatpush1.msra.mxu0 0.0
        %186 = vmatprep.subr.mxu0 0.0
        %187 = vmatpush1.msra.mxu0 0.0
        %188 = vmatprep.subr.mxu0 0.0
        %189 = vmatpush1.msra.mxu0 0.0
        %190 = vmatprep.subr.mxu0 0.0
        %191 = vmatpush1.msra.mxu0 0.0
        %192 = vmatprep.subr.mxu0 0.0
        %193 = vmatpush1.msra.mxu0 0.0
        %194 = vmatprep.subr.mxu0 0.0
        %195 = vmatpush1.msra.mxu0 0.0
        %196 = vmatprep.subr.mxu0 0.0
        %197 = vmatpush1.msra.mxu0 0.0
        %198 = vmatprep.subr.mxu0 0.0
        %199 = vmatpush1.msra.mxu0 0.0
        %200 = vmatprep.subr.mxu0 0.0
        %201 = vmatpush1.msra.mxu0 0.0
        %202 = vmatprep.subr.mxu0 0.0
        %203 = vmatpush1.msra.mxu0 0.0
        %204 = vmatprep.subr.mxu0 0.0
        %205 = vmatpush1.msra.mxu0 0.0
        %206 = vmatprep.subr.mxu0 0.0
        %207 = vmatpush1.msra.mxu0 0.0
        %208 = vmatprep.subr.mxu0 0.0
        %209 = vmatpush1.msra.mxu0 0.0
        %210 = vmatprep.subr.mxu0 0.0
        %211 = vmatpush1.msra.mxu0 0.0
        %212 = vmatprep.subr.mxu0 0.0
        %213 = vmatpush1.msra.mxu0 0.0
        %214 = vmatprep.subr.mxu0 0.0
        %215 = vmatpush1.msra.mxu0 0.0
        %216 = vmatprep.subr.mxu0 0.0
        %217 = vmatpush1.msra.mxu0 0.0
        %218 = vmatprep.subr.mxu0 0.0
        %219 = vmatpush1.msra.mxu0 0.0
        %220 = vmatprep.subr.mxu0 0.0
        %221 = vmatpush1.msra.mxu0 0.0
        %222 = vmatprep.subr.mxu0 0.0
        %223 = vmatpush1.msra.mxu0 0.0
        %224 = vmatprep.subr.mxu0 0.0
        %225 = vmatpush1.msra.mxu0 0.0
        %226 = vmatprep.subr.mxu0 0.0
        %227 = vmatpush1.msra.mxu0 0.0
        %228 = vmatprep.subr.mxu0 0.0
        %229 = vmatpush1.msra.mxu0 0.0
        %230 = vmatprep.subr.mxu0 0.0
        %231 = vmatpush1.msra.mxu0 0.0
        %232 = vmatprep.subr.mxu0 0.0
        %233 = vmatpush1.msra.mxu0 0.0
        %234 = vmatprep.subr.mxu0 0.0
        %235 = vmatpush1.msra.mxu0 0.0
        %236 = vmatprep.subr.mxu0 0.0
        %237 = vmatpush1.msra.mxu0 0.0
        %238 = vmatprep.subr.mxu0 0.0
        %239 = vmatpush1.msra.mxu0 0.0
        %240 = vmatprep.mubr.f32.mxu0 0.0
        %v241 = vand.u32 %v173, 4294901760
        %v242 = vsub.f32 %v173, %v241
        %v243 = vand.u32 %v242, 4294901760
        %v244 = vsub.f32 %v242, %v243
        %v245 = vand.u32 %v244, 4294901760
        %246 = vmatmul.mubr.f32.gmra.mrb[0].mxu0 %v245
        %v247 = vpop.f32.mrb[0].mxu0
        %v248 = vadd.f32 0.0, %v247
        %v249 = vpop.f32.mrb[0].mxu0
        %250 = vdwg.mxu0
        %251 = vmatprep.subr.mxu0 0.0
        %v252 = vand.u32 %v150, 4294901760
        %v253 = vsub.f32 %v150, %v252
        %v254 = vand.u32 %v253, 4294901760
        %v255 = vsub.f32 %v253, %v254
        %v256 = vand.u32 %v255, 4294901760
        %257 = vmatpush1.msra.mxu0 %v256
        %258 = vmatprep.subr.mxu0 0.0
        %259 = vmatpush1.msra.mxu0 0.0
        %260 = vmatprep.subr.mxu0 0.0
        %261 = vmatpush1.msra.mxu0 0.0
        %262 = vmatprep.subr.mxu0 0.0
        %263 = vmatpush1.msra.mxu0 0.0
        %264 = vmatprep.subr.mxu0 0.0
        %265 = vmatpush1.msra.mxu0 0.0
        %266 = vmatprep.subr.mxu0 0.0
        %267 = vmatpush1.msra.mxu0 0.0
        %268 = vmatprep.subr.mxu0 0.0
        %269 = vmatpush1.msra.mxu0 0.0
        %270 = vmatprep.subr.mxu0 0.0
        %271 = vmatpush1.msra.mxu0 0.0
        %272 = vmatprep.subr.mxu0 0.0
        %273 = vmatpush1.msra.mxu0 0.0
        %274 = vmatprep.subr.mxu0 0.0
        %275 = vmatpush1.msra.mxu0 0.0
        %276 = vmatprep.subr.mxu0 0.0
        %277 = vmatpush1.msra.mxu0 0.0
        %278 = vmatprep.subr.mxu0 0.0
        %279 = vmatpush1.msra.mxu0 0.0
        %280 = vmatprep.subr.mxu0 0.0
        %281 = vmatpush1.msra.mxu0 0.0
        %282 = vmatprep.subr.mxu0 0.0
        %283 = vmatpush1.msra.mxu0 0.0
        %284 = vmatprep.subr.mxu0 0.0
        %285 = vmatpush1.msra.mxu0 0.0
        %286 = vmatprep.subr.mxu0 0.0
        %287 = vmatpush1.msra.mxu0 0.0
        %288 = vmatprep.subr.mxu0 0.0
        %289 = vmatpush1.msra.mxu0 0.0
        %290 = vmatprep.subr.mxu0 0.0
        %291 = vmatpush1.msra.mxu0 0.0
        %292 = vmatprep.subr.mxu0 0.0
        %293 = vmatpush1.msra.mxu0 0.0
        %294 = vmatprep.subr.mxu0 0.0
        %295 = vmatpush1.msra.mxu0 0.0
        %296 = vmatprep.subr.mxu0 0.0
        %297 = vmatpush1.msra.mxu0 0.0
        %298 = vmatprep.subr.mxu0 0.0
        %299 = vmatpush1.msra.mxu0 0.0
        %300 = vmatprep.subr.mxu0 0.0
        %301 = vmatpush1.msra.mxu0 0.0
        %302 = vmatprep.subr.mxu0 0.0
        %303 = vmatpush1.msra.mxu0 0.0
        %304 = vmatprep.subr.mxu0 0.0
        %305 = vmatpush1.msra.mxu0 0.0
        %306 = vmatprep.subr.mxu0 0.0
        %307 = vmatpush1.msra.mxu0 0.0
        %308 = vmatprep.subr.mxu0 0.0
        %309 = vmatpush1.msra.mxu0 0.0
        %310 = vmatprep.subr.mxu0 0.0
        %311 = vmatpush1.msra.mxu0 0.0
        %312 = vmatprep.subr.mxu0 0.0
        %313 = vmatpush1.msra.mxu0 0.0
        %314 = vmatprep.subr.mxu0 0.0
        %315 = vmatpush1.msra.mxu0 0.0
        %316 = vmatprep.subr.mxu0 0.0
        %317 = vmatpush1.msra.mxu0 0.0
        %318 = vmatprep.subr.mxu0 0.0
        %319 = vmatpush1.msra.mxu0 0.0
        %320 = vmatprep.mubr.f32.mxu0 0.0
        %v321 = vand.u32 %v173, 4294901760
        %322 = vmatmul.mubr.f32.gmra.mrb[0].mxu0 %v321
        %v323 = vpop.f32.mrb[0].mxu0
        %v324 = vadd.f32 %v248, %v323
        %v325 = vpop.f32.mrb[0].mxu0
        %326 = vdwg.mxu0
        %327 = vmatprep.subr.mxu0 0.0
        %v328 = vand.u32 %v150, 4294901760
        %v329 = vsub.f32 %v150, %v328
        %330 = vmatpush1.msra.mxu0 %v329
        %331 = vmatprep.subr.mxu0 0.0
        %332 = vmatpush1.msra.mxu0 0.0
        %333 = vmatprep.subr.mxu0 0.0
        %334 = vmatpush1.msra.mxu0 0.0
        %335 = vmatprep.subr.mxu0 0.0
        %336 = vmatpush1.msra.mxu0 0.0
        %337 = vmatprep.subr.mxu0 0.0
        %338 = vmatpush1.msra.mxu0 0.0
        %339 = vmatprep.subr.mxu0 0.0
        %340 = vmatpush1.msra.mxu0 0.0
        %341 = vmatprep.subr.mxu0 0.0
        %342 = vmatpush1.msra.mxu0 0.0
        %343 = vmatprep.subr.mxu0 0.0
        %344 = vmatpush1.msra.mxu0 0.0
        %345 = vmatprep.subr.mxu0 0.0
        %346 = vmatpush1.msra.mxu0 0.0
        %347 = vmatprep.subr.mxu0 0.0
        %348 = vmatpush1.msra.mxu0 0.0
        %349 = vmatprep.subr.mxu0 0.0
        %350 = vmatpush1.msra.mxu0 0.0
        %351 = vmatprep.subr.mxu0 0.0
        %352 = vmatpush1.msra.mxu0 0.0
        %353 = vmatprep.subr.mxu0 0.0
        %354 = vmatpush1.msra.mxu0 0.0
        %355 = vmatprep.subr.mxu0 0.0
        %356 = vmatpush1.msra.mxu0 0.0
        %357 = vmatprep.subr.mxu0 0.0
        %358 = vmatpush1.msra.mxu0 0.0
        %359 = vmatprep.subr.mxu0 0.0
        %360 = vmatpush1.msra.mxu0 0.0
        %361 = vmatprep.subr.mxu0 0.0
        %362 = vmatpush1.msra.mxu0 0.0
        %363 = vmatprep.subr.mxu0 0.0
        %364 = vmatpush1.msra.mxu0 0.0
        %365 = vmatprep.subr.mxu0 0.0
        %366 = vmatpush1.msra.mxu0 0.0
        %367 = vmatprep.subr.mxu0 0.0
        %368 = vmatpush1.msra.mxu0 0.0
        %369 = vmatprep.subr.mxu0 0.0
        %370 = vmatpush1.msra.mxu0 0.0
        %371 = vmatprep.subr.mxu0 0.0
        %372 = vmatpush1.msra.mxu0 0.0
        %373 = vmatprep.subr.mxu0 0.0
        %374 = vmatpush1.msra.mxu0 0.0
        %375 = vmatprep.subr.mxu0 0.0
        %376 = vmatpush1.msra.mxu0 0.0
        %377 = vmatprep.subr.mxu0 0.0
        %378 = vmatpush1.msra.mxu0 0.0
        %379 = vmatprep.subr.mxu0 0.0
        %380 = vmatpush1.msra.mxu0 0.0
        %381 = vmatprep.subr.mxu0 0.0
        %382 = vmatpush1.msra.mxu0 0.0
        %383 = vmatprep.subr.mxu0 0.0
        %384 = vmatpush1.msra.mxu0 0.0
        %385 = vmatprep.subr.mxu0 0.0
        %386 = vmatpush1.msra.mxu0 0.0
        %387 = vmatprep.subr.mxu0 0.0
        %388 = vmatpush1.msra.mxu0 0.0
        %389 = vmatprep.subr.mxu0 0.0
        %390 = vmatpush1.msra.mxu0 0.0
        %391 = vmatprep.subr.mxu0 0.0
        %392 = vmatpush1.msra.mxu0 0.0
        %393 = vmatprep.mubr.f32.mxu0 0.0
        %v394 = vand.u32 %v173, 4294901760
        %v395 = vsub.f32 %v173, %v394
        %396 = vmatmul.mubr.f32.gmra.mrb[0].mxu0 %v395
        %v397 = vpop.f32.mrb[0].mxu0
        %v398 = vadd.f32 %v324, %v397
        %v399 = vpop.f32.mrb[0].mxu0
        %400 = vdwg.mxu0
        %401 = vmatprep.subr.mxu0 0.0
        %v402 = vand.u32 %v150, 4294901760
        %403 = vmatpush1.msra.mxu0 %v402
        %404 = vmatprep.subr.mxu0 0.0
        %405 = vmatpush1.msra.mxu0 0.0
        %406 = vmatprep.subr.mxu0 0.0
        %407 = vmatpush1.msra.mxu0 0.0
        %408 = vmatprep.subr.mxu0 0.0
        %409 = vmatpush1.msra.mxu0 0.0
        %410 = vmatprep.subr.mxu0 0.0
        %411 = vmatpush1.msra.mxu0 0.0
        %412 = vmatprep.subr.mxu0 0.0
        %413 = vmatpush1.msra.mxu0 0.0
        %414 = vmatprep.subr.mxu0 0.0
        %415 = vmatpush1.msra.mxu0 0.0
        %416 = vmatprep.subr.mxu0 0.0
        %417 = vmatpush1.msra.mxu0 0.0
        %418 = vmatprep.subr.mxu0 0.0
        %419 = vmatpush1.msra.mxu0 0.0
        %420 = vmatprep.subr.mxu0 0.0
        %421 = vmatpush1.msra.mxu0 0.0
        %422 = vmatprep.subr.mxu0 0.0
        %423 = vmatpush1.msra.mxu0 0.0
        %424 = vmatprep.subr.mxu0 0.0
        %425 = vmatpush1.msra.mxu0 0.0
        %426 = vmatprep.subr.mxu0 0.0
        %427 = vmatpush1.msra.mxu0 0.0
        %428 = vmatprep.subr.mxu0 0.0
        %429 = vmatpush1.msra.mxu0 0.0
        %430 = vmatprep.subr.mxu0 0.0
        %431 = vmatpush1.msra.mxu0 0.0
        %432 = vmatprep.subr.mxu0 0.0
        %433 = vmatpush1.msra.mxu0 0.0
        %434 = vmatprep.subr.mxu0 0.0
        %435 = vmatpush1.msra.mxu0 0.0
        %436 = vmatprep.subr.mxu0 0.0
        %437 = vmatpush1.msra.mxu0 0.0
        %438 = vmatprep.subr.mxu0 0.0
        %439 = vmatpush1.msra.mxu0 0.0
        %440 = vmatprep.subr.mxu0 0.0
        %441 = vmatpush1.msra.mxu0 0.0
        %442 = vmatprep.subr.mxu0 0.0
        %443 = vmatpush1.msra.mxu0 0.0
        %444 = vmatprep.subr.mxu0 0.0
        %445 = vmatpush1.msra.mxu0 0.0
        %446 = vmatprep.subr.mxu0 0.0
        %447 = vmatpush1.msra.mxu0 0.0
        %448 = vmatprep.subr.mxu0 0.0
        %449 = vmatpush1.msra.mxu0 0.0
        %450 = vmatprep.subr.mxu0 0.0
        %451 = vmatpush1.msra.mxu0 0.0
        %452 = vmatprep.subr.mxu0 0.0
        %453 = vmatpush1.msra.mxu0 0.0
        %454 = vmatprep.subr.mxu0 0.0
        %455 = vmatpush1.msra.mxu0 0.0
        %456 = vmatprep.subr.mxu0 0.0
        %457 = vmatpush1.msra.mxu0 0.0
        %458 = vmatprep.subr.mxu0 0.0
        %459 = vmatpush1.msra.mxu0 0.0
        %460 = vmatprep.subr.mxu0 0.0
        %461 = vmatpush1.msra.mxu0 0.0
        %462 = vmatprep.subr.mxu0 0.0
        %463 = vmatpush1.msra.mxu0 0.0
        %464 = vmatprep.subr.mxu0 0.0
        %465 = vmatpush1.msra.mxu0 0.0
        %466 = vmatprep.mubr.f32.mxu0 0.0
        %v467 = vand.u32 %v173, 4294901760
        %v468 = vsub.f32 %v173, %v467
        %v469 = vand.u32 %v468, 4294901760
        %470 = vmatmul.mubr.f32.gmra.mrb[0].mxu0 %v469
        %v471 = vpop.f32.mrb[0].mxu0
        %v472 = vadd.f32 %v398, %v471
        %v473 = vpop.f32.mrb[0].mxu0
        %474 = vdwg.mxu0
        %475 = vmatprep.subr.mxu0 0.0
        %v476 = vand.u32 %v150, 4294901760
        %v477 = vsub.f32 %v150, %v476
        %v478 = vand.u32 %v477, 4294901760
        %479 = vmatpush1.msra.mxu0 %v478
        %480 = vmatprep.subr.mxu0 0.0
        %481 = vmatpush1.msra.mxu0 0.0
        %482 = vmatprep.subr.mxu0 0.0
        %483 = vmatpush1.msra.mxu0 0.0
        %484 = vmatprep.subr.mxu0 0.0
        %485 = vmatpush1.msra.mxu0 0.0
        %486 = vmatprep.subr.mxu0 0.0
        %487 = vmatpush1.msra.mxu0 0.0
        %488 = vmatprep.subr.mxu0 0.0
        %489 = vmatpush1.msra.mxu0 0.0
        %490 = vmatprep.subr.mxu0 0.0
        %491 = vmatpush1.msra.mxu0 0.0
        %492 = vmatprep.subr.mxu0 0.0
        %493 = vmatpush1.msra.mxu0 0.0
        %494 = vmatprep.subr.mxu0 0.0
        %495 = vmatpush1.msra.mxu0 0.0
        %496 = vmatprep.subr.mxu0 0.0
        %497 = vmatpush1.msra.mxu0 0.0
        %498 = vmatprep.subr.mxu0 0.0
        %499 = vmatpush1.msra.mxu0 0.0
        %500 = vmatprep.subr.mxu0 0.0
        %501 = vmatpush1.msra.mxu0 0.0
        %502 = vmatprep.subr.mxu0 0.0
        %503 = vmatpush1.msra.mxu0 0.0
        %504 = vmatprep.subr.mxu0 0.0
        %505 = vmatpush1.msra.mxu0 0.0
        %506 = vmatprep.subr.mxu0 0.0
        %507 = vmatpush1.msra.mxu0 0.0
        %508 = vmatprep.subr.mxu0 0.0
        %509 = vmatpush1.msra.mxu0 0.0
        %510 = vmatprep.subr.mxu0 0.0
        %511 = vmatpush1.msra.mxu0 0.0
        %512 = vmatprep.subr.mxu0 0.0
        %513 = vmatpush1.msra.mxu0 0.0
        %514 = vmatprep.subr.mxu0 0.0
        %515 = vmatpush1.msra.mxu0 0.0
        %516 = vmatprep.subr.mxu0 0.0
        %517 = vmatpush1.msra.mxu0 0.0
        %518 = vmatprep.subr.mxu0 0.0
        %519 = vmatpush1.msra.mxu0 0.0
        %520 = vmatprep.subr.mxu0 0.0
        %521 = vmatpush1.msra.mxu0 0.0
        %522 = vmatprep.subr.mxu0 0.0
        %523 = vmatpush1.msra.mxu0 0.0
        %524 = vmatprep.subr.mxu0 0.0
        %525 = vmatpush1.msra.mxu0 0.0
        %526 = vmatprep.subr.mxu0 0.0
        %527 = vmatpush1.msra.mxu0 0.0
        %528 = vmatprep.subr.mxu0 0.0
        %529 = vmatpush1.msra.mxu0 0.0
        %530 = vmatprep.subr.mxu0 0.0
        %531 = vmatpush1.msra.mxu0 0.0
        %532 = vmatprep.subr.mxu0 0.0
        %533 = vmatpush1.msra.mxu0 0.0
        %534 = vmatprep.subr.mxu0 0.0
        %535 = vmatpush1.msra.mxu0 0.0
        %536 = vmatprep.subr.mxu0 0.0
        %537 = vmatpush1.msra.mxu0 0.0
        %538 = vmatprep.subr.mxu0 0.0
        %539 = vmatpush1.msra.mxu0 0.0
        %540 = vmatprep.subr.mxu0 0.0
        %541 = vmatpush1.msra.mxu0 0.0
        %542 = vmatprep.mubr.f32.mxu0 0.0
        %v543 = vand.u32 %v173, 4294901760
        %544 = vmatmul.mubr.f32.gmra.mrb[0].mxu0 %v543
        %v545 = vpop.f32.mrb[0].mxu0
        %v546 = vadd.f32 %v472, %v545
        %v547 = vpop.f32.mrb[0].mxu0
        %548 = vdwg.mxu0
        %549 = vmatprep.subr.mxu0 0.0
        %v550 = vand.u32 %v150, 4294901760
        %551 = vmatpush1.msra.mxu0 %v550
        %552 = vmatprep.subr.mxu0 0.0
        %553 = vmatpush1.msra.mxu0 0.0
        %554 = vmatprep.subr.mxu0 0.0
        %555 = vmatpush1.msra.mxu0 0.0
        %556 = vmatprep.subr.mxu0 0.0
        %557 = vmatpush1.msra.mxu0 0.0
        %558 = vmatprep.subr.mxu0 0.0
        %559 = vmatpush1.msra.mxu0 0.0
        %560 = vmatprep.subr.mxu0 0.0
        %561 = vmatpush1.msra.mxu0 0.0
        %562 = vmatprep.subr.mxu0 0.0
        %563 = vmatpush1.msra.mxu0 0.0
        %564 = vmatprep.subr.mxu0 0.0
        %565 = vmatpush1.msra.mxu0 0.0
        %566 = vmatprep.subr.mxu0 0.0
        %567 = vmatpush1.msra.mxu0 0.0
        %568 = vmatprep.subr.mxu0 0.0
        %569 = vmatpush1.msra.mxu0 0.0
        %570 = vmatprep.subr.mxu0 0.0
        %571 = vmatpush1.msra.mxu0 0.0
        %572 = vmatprep.subr.mxu0 0.0
        %573 = vmatpush1.msra.mxu0 0.0
        %574 = vmatprep.subr.mxu0 0.0
        %575 = vmatpush1.msra.mxu0 0.0
        %576 = vmatprep.subr.mxu0 0.0
        %577 = vmatpush1.msra.mxu0 0.0
        %578 = vmatprep.subr.mxu0 0.0
        %579 = vmatpush1.msra.mxu0 0.0
        %580 = vmatprep.subr.mxu0 0.0
        %581 = vmatpush1.msra.mxu0 0.0
        %582 = vmatprep.subr.mxu0 0.0
        %583 = vmatpush1.msra.mxu0 0.0
        %584 = vmatprep.subr.mxu0 0.0
        %585 = vmatpush1.msra.mxu0 0.0
        %586 = vmatprep.subr.mxu0 0.0
        %587 = vmatpush1.msra.mxu0 0.0
        %588 = vmatprep.subr.mxu0 0.0
        %589 = vmatpush1.msra.mxu0 0.0
        %590 = vmatprep.subr.mxu0 0.0
        %591 = vmatpush1.msra.mxu0 0.0
        %592 = vmatprep.subr.mxu0 0.0
        %593 = vmatpush1.msra.mxu0 0.0
        %594 = vmatprep.subr.mxu0 0.0
        %595 = vmatpush1.msra.mxu0 0.0
        %596 = vmatprep.subr.mxu0 0.0
        %597 = vmatpush1.msra.mxu0 0.0
        %598 = vmatprep.subr.mxu0 0.0
        %599 = vmatpush1.msra.mxu0 0.0
        %600 = vmatprep.subr.mxu0 0.0
        %601 = vmatpush1.msra.mxu0 0.0
        %602 = vmatprep.subr.mxu0 0.0
        %603 = vmatpush1.msra.mxu0 0.0
        %604 = vmatprep.subr.mxu0 0.0
        %605 = vmatpush1.msra.mxu0 0.0
        %606 = vmatprep.subr.mxu0 0.0
        %607 = vmatpush1.msra.mxu0 0.0
        %608 = vmatprep.subr.mxu0 0.0
        %609 = vmatpush1.msra.mxu0 0.0
        %610 = vmatprep.subr.mxu0 0.0
        %611 = vmatpush1.msra.mxu0 0.0
        %612 = vmatprep.subr.mxu0 0.0
        %613 = vmatpush1.msra.mxu0 0.0
        %614 = vmatprep.mubr.f32.mxu0 0.0
        %v615 = vand.u32 %v173, 4294901760
        %616 = vmatmul.mubr.f32.gmra.mrb[0].mxu0 %v615
        %v617 = vpop.f32.mrb[0].mxu0
        %v618 = vadd.f32 %v546, %v617
        %v619 = vpop.f32.mrb[0].mxu0
        %620 = vdwg.mxu0
        %v621 = vmul.f32 %v618, %v169
        %vm622 = vcmask 15360
        %v624 = vsel %vm622, %v164, 0
        %vm626 = vcmask 1041408
        %v628 = vsel %vm626, %v621, 0
        %630 = vmatprep.subr.mxu0 0.0
        %v631 = vand.u32 %v628, 4294901760
        %632 = vmatpush1.msra.mxu0 %v631
        %633 = vmatprep.subr.mxu0 0.0
        %634 = vmatpush1.msra.mxu0 0.0
        %635 = vmatprep.subr.mxu0 0.0
        %636 = vmatpush1.msra.mxu0 0.0
        %637 = vmatprep.subr.mxu0 0.0
        %638 = vmatpush1.msra.mxu0 0.0
        %639 = vmatprep.subr.mxu0 0.0
        %640 = vmatpush1.msra.mxu0 0.0
        %641 = vmatprep.subr.mxu0 0.0
        %642 = vmatpush1.msra.mxu0 0.0
        %643 = vmatprep.subr.mxu0 0.0
        %644 = vmatpush1.msra.mxu0 0.0
        %645 = vmatprep.subr.mxu0 0.0
        %646 = vmatpush1.msra.mxu0 0.0
        %647 = vmatprep.subr.mxu0 0.0
        %648 = vmatpush1.msra.mxu0 0.0
        %649 = vmatprep.subr.mxu0 0.0
        %650 = vmatpush1.msra.mxu0 0.0
        %651 = vmatprep.subr.mxu0 0.0
        %652 = vmatpush1.msra.mxu0 0.0
        %653 = vmatprep.subr.mxu0 0.0
        %654 = vmatpush1.msra.mxu0 0.0
        %655 = vmatprep.subr.mxu0 0.0
        %656 = vmatpush1.msra.mxu0 0.0
        %657 = vmatprep.subr.mxu0 0.0
        %658 = vmatpush1.msra.mxu0 0.0
        %659 = vmatprep.subr.mxu0 0.0
        %660 = vmatpush1.msra.mxu0 0.0
        %661 = vmatprep.subr.mxu0 0.0
        %662 = vmatpush1.msra.mxu0 0.0
        %663 = vmatprep.subr.mxu0 0.0
        %664 = vmatpush1.msra.mxu0 0.0
        %665 = vmatprep.subr.mxu0 0.0
        %666 = vmatpush1.msra.mxu0 0.0
        %667 = vmatprep.subr.mxu0 0.0
        %668 = vmatpush1.msra.mxu0 0.0
        %669 = vmatprep.subr.mxu0 0.0
        %670 = vmatpush1.msra.mxu0 0.0
        %671 = vmatprep.subr.mxu0 0.0
        %672 = vmatpush1.msra.mxu0 0.0
        %673 = vmatprep.subr.mxu0 0.0
        %674 = vmatpush1.msra.mxu0 0.0
        %675 = vmatprep.subr.mxu0 0.0
        %676 = vmatpush1.msra.mxu0 0.0
        %677 = vmatprep.subr.mxu0 0.0
        %678 = vmatpush1.msra.mxu0 0.0
        %679 = vmatprep.subr.mxu0 0.0
        %680 = vmatpush1.msra.mxu0 0.0
        %681 = vmatprep.subr.mxu0 0.0
        %682 = vmatpush1.msra.mxu0 0.0
        %683 = vmatprep.subr.mxu0 0.0
        %684 = vmatpush1.msra.mxu0 0.0
        %685 = vmatprep.subr.mxu0 0.0
        %686 = vmatpush1.msra.mxu0 0.0
        %687 = vmatprep.subr.mxu0 0.0
        %688 = vmatpush1.msra.mxu0 0.0
        %689 = vmatprep.subr.mxu0 0.0
        %690 = vmatpush1.msra.mxu0 0.0
        %691 = vmatprep.subr.mxu0 0.0
        %692 = vmatpush1.msra.mxu0 0.0
        %693 = vmatprep.subr.mxu0 0.0
        %694 = vmatpush1.msra.mxu0 0.0
        %695 = vmatprep.mubr.f32.mxu0 0.0
        %v696 = vand.u32 %v624, 4294901760
        %v697 = vsub.f32 %v624, %v696
        %v698 = vand.u32 %v697, 4294901760
        %v699 = vsub.f32 %v697, %v698
        %v700 = vand.u32 %v699, 4294901760
        %701 = vmatmul.mubr.f32.gmra.mrb[0].mxu0 %v700
        %v702 = vpop.f32.mrb[0].mxu0
        %v703 = vadd.f32 0.0, %v702
        %v704 = vpop.f32.mrb[0].mxu0
        %705 = vdwg.mxu0
        %706 = vmatprep.subr.mxu0 0.0
        %v707 = vand.u32 %v628, 4294901760
        %v708 = vsub.f32 %v628, %v707
        %v709 = vand.u32 %v708, 4294901760
        %v710 = vsub.f32 %v708, %v709
        %v711 = vand.u32 %v710, 4294901760
        %712 = vmatpush1.msra.mxu0 %v711
        %713 = vmatprep.subr.mxu0 0.0
        %714 = vmatpush1.msra.mxu0 0.0
        %715 = vmatprep.subr.mxu0 0.0
        %716 = vmatpush1.msra.mxu0 0.0
        %717 = vmatprep.subr.mxu0 0.0
        %718 = vmatpush1.msra.mxu0 0.0
        %719 = vmatprep.subr.mxu0 0.0
        %720 = vmatpush1.msra.mxu0 0.0
        %721 = vmatprep.subr.mxu0 0.0
        %722 = vmatpush1.msra.mxu0 0.0
        %723 = vmatprep.subr.mxu0 0.0
        %724 = vmatpush1.msra.mxu0 0.0
        %725 = vmatprep.subr.mxu0 0.0
        %726 = vmatpush1.msra.mxu0 0.0
        %727 = vmatprep.subr.mxu0 0.0
        %728 = vmatpush1.msra.mxu0 0.0
        %729 = vmatprep.subr.mxu0 0.0
        %730 = vmatpush1.msra.mxu0 0.0
        %731 = vmatprep.subr.mxu0 0.0
        %732 = vmatpush1.msra.mxu0 0.0
        %733 = vmatprep.subr.mxu0 0.0
        %734 = vmatpush1.msra.mxu0 0.0
        %735 = vmatprep.subr.mxu0 0.0
        %736 = vmatpush1.msra.mxu0 0.0
        %737 = vmatprep.subr.mxu0 0.0
        %738 = vmatpush1.msra.mxu0 0.0
        %739 = vmatprep.subr.mxu0 0.0
        %740 = vmatpush1.msra.mxu0 0.0
        %741 = vmatprep.subr.mxu0 0.0
        %742 = vmatpush1.msra.mxu0 0.0
        %743 = vmatprep.subr.mxu0 0.0
        %744 = vmatpush1.msra.mxu0 0.0
        %745 = vmatprep.subr.mxu0 0.0
        %746 = vmatpush1.msra.mxu0 0.0
        %747 = vmatprep.subr.mxu0 0.0
        %748 = vmatpush1.msra.mxu0 0.0
        %749 = vmatprep.subr.mxu0 0.0
        %750 = vmatpush1.msra.mxu0 0.0
        %751 = vmatprep.subr.mxu0 0.0
        %752 = vmatpush1.msra.mxu0 0.0
        %753 = vmatprep.subr.mxu0 0.0
        %754 = vmatpush1.msra.mxu0 0.0
        %755 = vmatprep.subr.mxu0 0.0
        %756 = vmatpush1.msra.mxu0 0.0
        %757 = vmatprep.subr.mxu0 0.0
        %758 = vmatpush1.msra.mxu0 0.0
        %759 = vmatprep.subr.mxu0 0.0
        %760 = vmatpush1.msra.mxu0 0.0
        %761 = vmatprep.subr.mxu0 0.0
        %762 = vmatpush1.msra.mxu0 0.0
        %763 = vmatprep.subr.mxu0 0.0
        %764 = vmatpush1.msra.mxu0 0.0
        %765 = vmatprep.subr.mxu0 0.0
        %766 = vmatpush1.msra.mxu0 0.0
        %767 = vmatprep.subr.mxu0 0.0
        %768 = vmatpush1.msra.mxu0 0.0
        %769 = vmatprep.subr.mxu0 0.0
        %770 = vmatpush1.msra.mxu0 0.0
        %771 = vmatprep.subr.mxu0 0.0
        %772 = vmatpush1.msra.mxu0 0.0
        %773 = vmatprep.subr.mxu0 0.0
        %774 = vmatpush1.msra.mxu0 0.0
        %775 = vmatprep.mubr.f32.mxu0 0.0
        %v776 = vand.u32 %v624, 4294901760
        %777 = vmatmul.mubr.f32.gmra.mrb[0].mxu0 %v776
        %v778 = vpop.f32.mrb[0].mxu0
        %v779 = vadd.f32 %v703, %v778
        %v780 = vpop.f32.mrb[0].mxu0
        %781 = vdwg.mxu0
        %782 = vmatprep.subr.mxu0 0.0
        %v783 = vand.u32 %v628, 4294901760
        %v784 = vsub.f32 %v628, %v783
        %785 = vmatpush1.msra.mxu0 %v784
        %786 = vmatprep.subr.mxu0 0.0
        %787 = vmatpush1.msra.mxu0 0.0
        %788 = vmatprep.subr.mxu0 0.0
        %789 = vmatpush1.msra.mxu0 0.0
        %790 = vmatprep.subr.mxu0 0.0
        %791 = vmatpush1.msra.mxu0 0.0
        %792 = vmatprep.subr.mxu0 0.0
        %793 = vmatpush1.msra.mxu0 0.0
        %794 = vmatprep.subr.mxu0 0.0
        %795 = vmatpush1.msra.mxu0 0.0
        %796 = vmatprep.subr.mxu0 0.0
        %797 = vmatpush1.msra.mxu0 0.0
        %798 = vmatprep.subr.mxu0 0.0
        %799 = vmatpush1.msra.mxu0 0.0
        %800 = vmatprep.subr.mxu0 0.0
        %801 = vmatpush1.msra.mxu0 0.0
        %802 = vmatprep.subr.mxu0 0.0
        %803 = vmatpush1.msra.mxu0 0.0
        %804 = vmatprep.subr.mxu0 0.0
        %805 = vmatpush1.msra.mxu0 0.0
        %806 = vmatprep.subr.mxu0 0.0
        %807 = vmatpush1.msra.mxu0 0.0
        %808 = vmatprep.subr.mxu0 0.0
        %809 = vmatpush1.msra.mxu0 0.0
        %810 = vmatprep.subr.mxu0 0.0
        %811 = vmatpush1.msra.mxu0 0.0
        %812 = vmatprep.subr.mxu0 0.0
        %813 = vmatpush1.msra.mxu0 0.0
        %814 = vmatprep.subr.mxu0 0.0
        %815 = vmatpush1.msra.mxu0 0.0
        %816 = vmatprep.subr.mxu0 0.0
        %817 = vmatpush1.msra.mxu0 0.0
        %818 = vmatprep.subr.mxu0 0.0
        %819 = vmatpush1.msra.mxu0 0.0
        %820 = vmatprep.subr.mxu0 0.0
        %821 = vmatpush1.msra.mxu0 0.0
        %822 = vmatprep.subr.mxu0 0.0
        %823 = vmatpush1.msra.mxu0 0.0
        %824 = vmatprep.subr.mxu0 0.0
        %825 = vmatpush1.msra.mxu0 0.0
        %826 = vmatprep.subr.mxu0 0.0
        %827 = vmatpush1.msra.mxu0 0.0
        %828 = vmatprep.subr.mxu0 0.0
        %829 = vmatpush1.msra.mxu0 0.0
        %830 = vmatprep.subr.mxu0 0.0
        %831 = vmatpush1.msra.mxu0 0.0
        %832 = vmatprep.subr.mxu0 0.0
        %833 = vmatpush1.msra.mxu0 0.0
        %834 = vmatprep.subr.mxu0 0.0
        %835 = vmatpush1.msra.mxu0 0.0
        %836 = vmatprep.subr.mxu0 0.0
        %837 = vmatpush1.msra.mxu0 0.0
        %838 = vmatprep.subr.mxu0 0.0
        %839 = vmatpush1.msra.mxu0 0.0
        %840 = vmatprep.subr.mxu0 0.0
        %841 = vmatpush1.msra.mxu0 0.0
        %842 = vmatprep.subr.mxu0 0.0
        %843 = vmatpush1.msra.mxu0 0.0
        %844 = vmatprep.subr.mxu0 0.0
        %845 = vmatpush1.msra.mxu0 0.0
        %846 = vmatprep.subr.mxu0 0.0
        %847 = vmatpush1.msra.mxu0 0.0
        %848 = vmatprep.mubr.f32.mxu0 0.0
        %v849 = vand.u32 %v624, 4294901760
        %v850 = vsub.f32 %v624, %v849
        %851 = vmatmul.mubr.f32.gmra.mrb[0].mxu0 %v850
        %v852 = vpop.f32.mrb[0].mxu0
        %v853 = vadd.f32 %v779, %v852
        %v854 = vpop.f32.mrb[0].mxu0
        %855 = vdwg.mxu0
        %856 = vmatprep.subr.mxu0 0.0
        %v857 = vand.u32 %v628, 4294901760
        %858 = vmatpush1.msra.mxu0 %v857
        %859 = vmatprep.subr.mxu0 0.0
        %860 = vmatpush1.msra.mxu0 0.0
        %861 = vmatprep.subr.mxu0 0.0
        %862 = vmatpush1.msra.mxu0 0.0
        %863 = vmatprep.subr.mxu0 0.0
        %864 = vmatpush1.msra.mxu0 0.0
        %865 = vmatprep.subr.mxu0 0.0
        %866 = vmatpush1.msra.mxu0 0.0
        %867 = vmatprep.subr.mxu0 0.0
        %868 = vmatpush1.msra.mxu0 0.0
        %869 = vmatprep.subr.mxu0 0.0
        %870 = vmatpush1.msra.mxu0 0.0
        %871 = vmatprep.subr.mxu0 0.0
        %872 = vmatpush1.msra.mxu0 0.0
        %873 = vmatprep.subr.mxu0 0.0
        %874 = vmatpush1.msra.mxu0 0.0
        %875 = vmatprep.subr.mxu0 0.0
        %876 = vmatpush1.msra.mxu0 0.0
        %877 = vmatprep.subr.mxu0 0.0
        %878 = vmatpush1.msra.mxu0 0.0
        %879 = vmatprep.subr.mxu0 0.0
        %880 = vmatpush1.msra.mxu0 0.0
        %881 = vmatprep.subr.mxu0 0.0
        %882 = vmatpush1.msra.mxu0 0.0
        %883 = vmatprep.subr.mxu0 0.0
        %884 = vmatpush1.msra.mxu0 0.0
        %885 = vmatprep.subr.mxu0 0.0
        %886 = vmatpush1.msra.mxu0 0.0
        %887 = vmatprep.subr.mxu0 0.0
        %888 = vmatpush1.msra.mxu0 0.0
        %889 = vmatprep.subr.mxu0 0.0
        %890 = vmatpush1.msra.mxu0 0.0
        %891 = vmatprep.subr.mxu0 0.0
        %892 = vmatpush1.msra.mxu0 0.0
        %893 = vmatprep.subr.mxu0 0.0
        %894 = vmatpush1.msra.mxu0 0.0
        %895 = vmatprep.subr.mxu0 0.0
        %896 = vmatpush1.msra.mxu0 0.0
        %897 = vmatprep.subr.mxu0 0.0
        %898 = vmatpush1.msra.mxu0 0.0
        %899 = vmatprep.subr.mxu0 0.0
        %900 = vmatpush1.msra.mxu0 0.0
        %901 = vmatprep.subr.mxu0 0.0
        %902 = vmatpush1.msra.mxu0 0.0
        %903 = vmatprep.subr.mxu0 0.0
        %904 = vmatpush1.msra.mxu0 0.0
        %905 = vmatprep.subr.mxu0 0.0
        %906 = vmatpush1.msra.mxu0 0.0
        %907 = vmatprep.subr.mxu0 0.0
        %908 = vmatpush1.msra.mxu0 0.0
        %909 = vmatprep.subr.mxu0 0.0
        %910 = vmatpush1.msra.mxu0 0.0
        %911 = vmatprep.subr.mxu0 0.0
        %912 = vmatpush1.msra.mxu0 0.0
        %913 = vmatprep.subr.mxu0 0.0
        %914 = vmatpush1.msra.mxu0 0.0
        %915 = vmatprep.subr.mxu0 0.0
        %916 = vmatpush1.msra.mxu0 0.0
        %917 = vmatprep.subr.mxu0 0.0
        %918 = vmatpush1.msra.mxu0 0.0
        %919 = vmatprep.subr.mxu0 0.0
        %920 = vmatpush1.msra.mxu0 0.0
        %921 = vmatprep.mubr.f32.mxu0 0.0
        %v922 = vand.u32 %v624, 4294901760
        %v923 = vsub.f32 %v624, %v922
        %v924 = vand.u32 %v923, 4294901760
        %925 = vmatmul.mubr.f32.gmra.mrb[0].mxu0 %v924
        %v926 = vpop.f32.mrb[0].mxu0
        %v927 = vadd.f32 %v853, %v926
        %v928 = vpop.f32.mrb[0].mxu0
        %929 = vdwg.mxu0
        %930 = vmatprep.subr.mxu0 0.0
        %v931 = vand.u32 %v628, 4294901760
        %v932 = vsub.f32 %v628, %v931
        %v933 = vand.u32 %v932, 4294901760
        %934 = vmatpush1.msra.mxu0 %v933
        %935 = vmatprep.subr.mxu0 0.0
        %936 = vmatpush1.msra.mxu0 0.0
        %937 = vmatprep.subr.mxu0 0.0
        %938 = vmatpush1.msra.mxu0 0.0
        %939 = vmatprep.subr.mxu0 0.0
        %940 = vmatpush1.msra.mxu0 0.0
        %941 = vmatprep.subr.mxu0 0.0
        %942 = vmatpush1.msra.mxu0 0.0
        %943 = vmatprep.subr.mxu0 0.0
        %944 = vmatpush1.msra.mxu0 0.0
        %945 = vmatprep.subr.mxu0 0.0
        %946 = vmatpush1.msra.mxu0 0.0
        %947 = vmatprep.subr.mxu0 0.0
        %948 = vmatpush1.msra.mxu0 0.0
        %949 = vmatprep.subr.mxu0 0.0
        %950 = vmatpush1.msra.mxu0 0.0
        %951 = vmatprep.subr.mxu0 0.0
        %952 = vmatpush1.msra.mxu0 0.0
        %953 = vmatprep.subr.mxu0 0.0
        %954 = vmatpush1.msra.mxu0 0.0
        %955 = vmatprep.subr.mxu0 0.0
        %956 = vmatpush1.msra.mxu0 0.0
        %957 = vmatprep.subr.mxu0 0.0
        %958 = vmatpush1.msra.mxu0 0.0
        %959 = vmatprep.subr.mxu0 0.0
        %960 = vmatpush1.msra.mxu0 0.0
        %961 = vmatprep.subr.mxu0 0.0
        %962 = vmatpush1.msra.mxu0 0.0
        %963 = vmatprep.subr.mxu0 0.0
        %964 = vmatpush1.msra.mxu0 0.0
        %965 = vmatprep.subr.mxu0 0.0
        %966 = vmatpush1.msra.mxu0 0.0
        %967 = vmatprep.subr.mxu0 0.0
        %968 = vmatpush1.msra.mxu0 0.0
        %969 = vmatprep.subr.mxu0 0.0
        %970 = vmatpush1.msra.mxu0 0.0
        %971 = vmatprep.subr.mxu0 0.0
        %972 = vmatpush1.msra.mxu0 0.0
        %973 = vmatprep.subr.mxu0 0.0
        %974 = vmatpush1.msra.mxu0 0.0
        %975 = vmatprep.subr.mxu0 0.0
        %976 = vmatpush1.msra.mxu0 0.0
        %977 = vmatprep.subr.mxu0 0.0
        %978 = vmatpush1.msra.mxu0 0.0
        %979 = vmatprep.subr.mxu0 0.0
        %980 = vmatpush1.msra.mxu0 0.0
        %981 = vmatprep.subr.mxu0 0.0
        %982 = vmatpush1.msra.mxu0 0.0
        %983 = vmatprep.subr.mxu0 0.0
        %984 = vmatpush1.msra.mxu0 0.0
        %985 = vmatprep.subr.mxu0 0.0
        %986 = vmatpush1.msra.mxu0 0.0
        %987 = vmatprep.subr.mxu0 0.0
        %988 = vmatpush1.msra.mxu0 0.0
        %989 = vmatprep.subr.mxu0 0.0
        %990 = vmatpush1.msra.mxu0 0.0
        %991 = vmatprep.subr.mxu0 0.0
        %992 = vmatpush1.msra.mxu0 0.0
        %993 = vmatprep.subr.mxu0 0.0
        %994 = vmatpush1.msra.mxu0 0.0
        %995 = vmatprep.subr.mxu0 0.0
        %996 = vmatpush1.msra.mxu0 0.0
        %997 = vmatprep.mubr.f32.mxu0 0.0
        %v998 = vand.u32 %v624, 4294901760
        %999 = vmatmul.mubr.f32.gmra.mrb[0].mxu0 %v998
        %v1000 = vpop.f32.mrb[0].mxu0
        %v1001 = vadd.f32 %v927, %v1000
        %v1002 = vpop.f32.mrb[0].mxu0
        %1003 = vdwg.mxu0
        %1004 = vmatprep.subr.mxu0 0.0
        %v1005 = vand.u32 %v628, 4294901760
        %1006 = vmatpush1.msra.mxu0 %v1005
        %1007 = vmatprep.subr.mxu0 0.0
        %1008 = vmatpush1.msra.mxu0 0.0
        %1009 = vmatprep.subr.mxu0 0.0
        %1010 = vmatpush1.msra.mxu0 0.0
        %1011 = vmatprep.subr.mxu0 0.0
        %1012 = vmatpush1.msra.mxu0 0.0
        %1013 = vmatprep.subr.mxu0 0.0
        %1014 = vmatpush1.msra.mxu0 0.0
        %1015 = vmatprep.subr.mxu0 0.0
        %1016 = vmatpush1.msra.mxu0 0.0
        %1017 = vmatprep.subr.mxu0 0.0
        %1018 = vmatpush1.msra.mxu0 0.0
        %1019 = vmatprep.subr.mxu0 0.0
        %1020 = vmatpush1.msra.mxu0 0.0
        %1021 = vmatprep.subr.mxu0 0.0
        %1022 = vmatpush1.msra.mxu0 0.0
        %1023 = vmatprep.subr.mxu0 0.0
        %1024 = vmatpush1.msra.mxu0 0.0
        %1025 = vmatprep.subr.mxu0 0.0
        %1026 = vmatpush1.msra.mxu0 0.0
        %1027 = vmatprep.subr.mxu0 0.0
        %1028 = vmatpush1.msra.mxu0 0.0
        %1029 = vmatprep.subr.mxu0 0.0
        %1030 = vmatpush1.msra.mxu0 0.0
        %1031 = vmatprep.subr.mxu0 0.0
        %1032 = vmatpush1.msra.mxu0 0.0
        %1033 = vmatprep.subr.mxu0 0.0
        %1034 = vmatpush1.msra.mxu0 0.0
        %1035 = vmatprep.subr.mxu0 0.0
        %1036 = vmatpush1.msra.mxu0 0.0
        %1037 = vmatprep.subr.mxu0 0.0
        %1038 = vmatpush1.msra.mxu0 0.0
        %1039 = vmatprep.subr.mxu0 0.0
        %1040 = vmatpush1.msra.mxu0 0.0
        %1041 = vmatprep.subr.mxu0 0.0
        %1042 = vmatpush1.msra.mxu0 0.0
        %1043 = vmatprep.subr.mxu0 0.0
        %1044 = vmatpush1.msra.mxu0 0.0
        %1045 = vmatprep.subr.mxu0 0.0
        %1046 = vmatpush1.msra.mxu0 0.0
        %1047 = vmatprep.subr.mxu0 0.0
        %1048 = vmatpush1.msra.mxu0 0.0
        %1049 = vmatprep.subr.mxu0 0.0
        %1050 = vmatpush1.msra.mxu0 0.0
        %1051 = vmatprep.subr.mxu0 0.0
        %1052 = vmatpush1.msra.mxu0 0.0
        %1053 = vmatprep.subr.mxu0 0.0
        %1054 = vmatpush1.msra.mxu0 0.0
        %1055 = vmatprep.subr.mxu0 0.0
        %1056 = vmatpush1.msra.mxu0 0.0
        %1057 = vmatprep.subr.mxu0 0.0
        %1058 = vmatpush1.msra.mxu0 0.0
        %1059 = vmatprep.subr.mxu0 0.0
        %1060 = vmatpush1.msra.mxu0 0.0
        %1061 = vmatprep.subr.mxu0 0.0
        %1062 = vmatpush1.msra.mxu0 0.0
        %1063 = vmatprep.subr.mxu0 0.0
        %1064 = vmatpush1.msra.mxu0 0.0
        %1065 = vmatprep.subr.mxu0 0.0
        %1066 = vmatpush1.msra.mxu0 0.0
        %1067 = vmatprep.subr.mxu0 0.0
        %1068 = vmatpush1.msra.mxu0 0.0
        %1069 = vmatprep.mubr.f32.mxu0 0.0
        %v1070 = vand.u32 %v624, 4294901760
        %1071 = vmatmul.mubr.f32.gmra.mrb[0].mxu0 %v1070
        %v1072 = vpop.f32.mrb[0].mxu0
        %v1073 = vadd.f32 %v1001, %v1072
        %v1074 = vpop.f32.mrb[0].mxu0
        %1075 = vdwg.mxu0
        %v1076 = vsub.f32 %v150, %v1073
        %v1077 = vmul.f32 %v1076, %v1076
        %1078 = vmatprep.subr.mxu0 0.0
        %v1079 = vand.u32 %v1077, 4294901760
        %1080 = vmatpush1.msra.mxu0 %v1079
        %1081 = vmatprep.subr.mxu0 0.0
        %1082 = vmatpush1.msra.mxu0 0.0
        %1083 = vmatprep.subr.mxu0 0.0
        %1084 = vmatpush1.msra.mxu0 0.0
        %1085 = vmatprep.subr.mxu0 0.0
        %1086 = vmatpush1.msra.mxu0 0.0
        %1087 = vmatprep.subr.mxu0 0.0
        %1088 = vmatpush1.msra.mxu0 0.0
        %1089 = vmatprep.subr.mxu0 0.0
        %1090 = vmatpush1.msra.mxu0 0.0
        %1091 = vmatprep.subr.mxu0 0.0
        %1092 = vmatpush1.msra.mxu0 0.0
        %1093 = vmatprep.subr.mxu0 0.0
        %1094 = vmatpush1.msra.mxu0 0.0
        %1095 = vmatprep.subr.mxu0 0.0
        %1096 = vmatpush1.msra.mxu0 0.0
        %1097 = vmatprep.subr.mxu0 0.0
        %1098 = vmatpush1.msra.mxu0 0.0
        %1099 = vmatprep.subr.mxu0 0.0
        %1100 = vmatpush1.msra.mxu0 0.0
        %1101 = vmatprep.subr.mxu0 0.0
        %1102 = vmatpush1.msra.mxu0 0.0
        %1103 = vmatprep.subr.mxu0 0.0
        %1104 = vmatpush1.msra.mxu0 0.0
        %1105 = vmatprep.subr.mxu0 0.0
        %1106 = vmatpush1.msra.mxu0 0.0
        %1107 = vmatprep.subr.mxu0 0.0
        %1108 = vmatpush1.msra.mxu0 0.0
        %1109 = vmatprep.subr.mxu0 0.0
        %1110 = vmatpush1.msra.mxu0 0.0
        %1111 = vmatprep.subr.mxu0 0.0
        %1112 = vmatpush1.msra.mxu0 0.0
        %1113 = vmatprep.subr.mxu0 0.0
        %1114 = vmatpush1.msra.mxu0 0.0
        %1115 = vmatprep.subr.mxu0 0.0
        %1116 = vmatpush1.msra.mxu0 0.0
        %1117 = vmatprep.subr.mxu0 0.0
        %1118 = vmatpush1.msra.mxu0 0.0
        %1119 = vmatprep.subr.mxu0 0.0
        %1120 = vmatpush1.msra.mxu0 0.0
        %1121 = vmatprep.subr.mxu0 0.0
        %1122 = vmatpush1.msra.mxu0 0.0
        %1123 = vmatprep.subr.mxu0 0.0
        %1124 = vmatpush1.msra.mxu0 0.0
        %1125 = vmatprep.subr.mxu0 0.0
        %1126 = vmatpush1.msra.mxu0 0.0
        %1127 = vmatprep.subr.mxu0 0.0
        %1128 = vmatpush1.msra.mxu0 0.0
        %1129 = vmatprep.subr.mxu0 0.0
        %1130 = vmatpush1.msra.mxu0 0.0
        %1131 = vmatprep.subr.mxu0 0.0
        %1132 = vmatpush1.msra.mxu0 0.0
        %1133 = vmatprep.subr.mxu0 0.0
        %1134 = vmatpush1.msra.mxu0 0.0
        %1135 = vmatprep.subr.mxu0 0.0
        %1136 = vmatpush1.msra.mxu0 0.0
        %1137 = vmatprep.subr.mxu0 0.0
        %1138 = vmatpush1.msra.mxu0 0.0
        %1139 = vmatprep.subr.mxu0 0.0
        %1140 = vmatpush1.msra.mxu0 0.0
        %1141 = vmatprep.subr.mxu0 0.0
        %1142 = vmatpush1.msra.mxu0 0.0
        %1143 = vmatprep.mubr.f32.mxu0 0.0
        %v1144 = vand.u32 %v173, 4294901760
        %v1145 = vsub.f32 %v173, %v1144
        %v1146 = vand.u32 %v1145, 4294901760
        %v1147 = vsub.f32 %v1145, %v1146
        %v1148 = vand.u32 %v1147, 4294901760
        %1149 = vmatmul.mubr.f32.gmra.mrb[0].mxu0 %v1148
        %v1150 = vpop.f32.mrb[0].mxu0
        %v1151 = vadd.f32 0.0, %v1150
        %v1152 = vpop.f32.mrb[0].mxu0
        %1153 = vdwg.mxu0
        %1154 = vmatprep.subr.mxu0 0.0
        %v1155 = vand.u32 %v1077, 4294901760
        %v1156 = vsub.f32 %v1077, %v1155
        %v1157 = vand.u32 %v1156, 4294901760
        %v1158 = vsub.f32 %v1156, %v1157
        %v1159 = vand.u32 %v1158, 4294901760
        %1160 = vmatpush1.msra.mxu0 %v1159
        %1161 = vmatprep.subr.mxu0 0.0
        %1162 = vmatpush1.msra.mxu0 0.0
        %1163 = vmatprep.subr.mxu0 0.0
        %1164 = vmatpush1.msra.mxu0 0.0
        %1165 = vmatprep.subr.mxu0 0.0
        %1166 = vmatpush1.msra.mxu0 0.0
        %1167 = vmatprep.subr.mxu0 0.0
        %1168 = vmatpush1.msra.mxu0 0.0
        %1169 = vmatprep.subr.mxu0 0.0
        %1170 = vmatpush1.msra.mxu0 0.0
        %1171 = vmatprep.subr.mxu0 0.0
        %1172 = vmatpush1.msra.mxu0 0.0
        %1173 = vmatprep.subr.mxu0 0.0
        %1174 = vmatpush1.msra.mxu0 0.0
        %1175 = vmatprep.subr.mxu0 0.0
        %1176 = vmatpush1.msra.mxu0 0.0
        %1177 = vmatprep.subr.mxu0 0.0
        %1178 = vmatpush1.msra.mxu0 0.0
        %1179 = vmatprep.subr.mxu0 0.0
        %1180 = vmatpush1.msra.mxu0 0.0
        %1181 = vmatprep.subr.mxu0 0.0
        %1182 = vmatpush1.msra.mxu0 0.0
        %1183 = vmatprep.subr.mxu0 0.0
        %1184 = vmatpush1.msra.mxu0 0.0
        %1185 = vmatprep.subr.mxu0 0.0
        %1186 = vmatpush1.msra.mxu0 0.0
        %1187 = vmatprep.subr.mxu0 0.0
        %1188 = vmatpush1.msra.mxu0 0.0
        %1189 = vmatprep.subr.mxu0 0.0
        %1190 = vmatpush1.msra.mxu0 0.0
        %1191 = vmatprep.subr.mxu0 0.0
        %1192 = vmatpush1.msra.mxu0 0.0
        %1193 = vmatprep.subr.mxu0 0.0
        %1194 = vmatpush1.msra.mxu0 0.0
        %1195 = vmatprep.subr.mxu0 0.0
        %1196 = vmatpush1.msra.mxu0 0.0
        %1197 = vmatprep.subr.mxu0 0.0
        %1198 = vmatpush1.msra.mxu0 0.0
        %1199 = vmatprep.subr.mxu0 0.0
        %1200 = vmatpush1.msra.mxu0 0.0
        %1201 = vmatprep.subr.mxu0 0.0
        %1202 = vmatpush1.msra.mxu0 0.0
        %1203 = vmatprep.subr.mxu0 0.0
        %1204 = vmatpush1.msra.mxu0 0.0
        %1205 = vmatprep.subr.mxu0 0.0
        %1206 = vmatpush1.msra.mxu0 0.0
        %1207 = vmatprep.subr.mxu0 0.0
        %1208 = vmatpush1.msra.mxu0 0.0
        %1209 = vmatprep.subr.mxu0 0.0
        %1210 = vmatpush1.msra.mxu0 0.0
        %1211 = vmatprep.subr.mxu0 0.0
        %1212 = vmatpush1.msra.mxu0 0.0
        %1213 = vmatprep.subr.mxu0 0.0
        %1214 = vmatpush1.msra.mxu0 0.0
        %1215 = vmatprep.subr.mxu0 0.0
        %1216 = vmatpush1.msra.mxu0 0.0
        %1217 = vmatprep.subr.mxu0 0.0
        %1218 = vmatpush1.msra.mxu0 0.0
        %1219 = vmatprep.subr.mxu0 0.0
        %1220 = vmatpush1.msra.mxu0 0.0
        %1221 = vmatprep.subr.mxu0 0.0
        %1222 = vmatpush1.msra.mxu0 0.0
        %1223 = vmatprep.mubr.f32.mxu0 0.0
        %v1224 = vand.u32 %v173, 4294901760
        %1225 = vmatmul.mubr.f32.gmra.mrb[0].mxu0 %v1224
        %v1226 = vpop.f32.mrb[0].mxu0
        %v1227 = vadd.f32 %v1151, %v1226
        %v1228 = vpop.f32.mrb[0].mxu0
        %1229 = vdwg.mxu0
        %1230 = vmatprep.subr.mxu0 0.0
        %v1231 = vand.u32 %v1077, 4294901760
        %v1232 = vsub.f32 %v1077, %v1231
        %1233 = vmatpush1.msra.mxu0 %v1232
        %1234 = vmatprep.subr.mxu0 0.0
        %1235 = vmatpush1.msra.mxu0 0.0
        %1236 = vmatprep.subr.mxu0 0.0
        %1237 = vmatpush1.msra.mxu0 0.0
        %1238 = vmatprep.subr.mxu0 0.0
        %1239 = vmatpush1.msra.mxu0 0.0
        %1240 = vmatprep.subr.mxu0 0.0
        %1241 = vmatpush1.msra.mxu0 0.0
        %1242 = vmatprep.subr.mxu0 0.0
        %1243 = vmatpush1.msra.mxu0 0.0
        %1244 = vmatprep.subr.mxu0 0.0
        %1245 = vmatpush1.msra.mxu0 0.0
        %1246 = vmatprep.subr.mxu0 0.0
        %1247 = vmatpush1.msra.mxu0 0.0
        %1248 = vmatprep.subr.mxu0 0.0
        %1249 = vmatpush1.msra.mxu0 0.0
        %1250 = vmatprep.subr.mxu0 0.0
        %1251 = vmatpush1.msra.mxu0 0.0
        %1252 = vmatprep.subr.mxu0 0.0
        %1253 = vmatpush1.msra.mxu0 0.0
        %1254 = vmatprep.subr.mxu0 0.0
        %1255 = vmatpush1.msra.mxu0 0.0
        %1256 = vmatprep.subr.mxu0 0.0
        %1257 = vmatpush1.msra.mxu0 0.0
        %1258 = vmatprep.subr.mxu0 0.0
        %1259 = vmatpush1.msra.mxu0 0.0
        %1260 = vmatprep.subr.mxu0 0.0
        %1261 = vmatpush1.msra.mxu0 0.0
        %1262 = vmatprep.subr.mxu0 0.0
        %1263 = vmatpush1.msra.mxu0 0.0
        %1264 = vmatprep.subr.mxu0 0.0
        %1265 = vmatpush1.msra.mxu0 0.0
        %1266 = vmatprep.subr.mxu0 0.0
        %1267 = vmatpush1.msra.mxu0 0.0
        %1268 = vmatprep.subr.mxu0 0.0
        %1269 = vmatpush1.msra.mxu0 0.0
        %1270 = vmatprep.subr.mxu0 0.0
        %1271 = vmatpush1.msra.mxu0 0.0
        %1272 = vmatprep.subr.mxu0 0.0
        %1273 = vmatpush1.msra.mxu0 0.0
        %1274 = vmatprep.subr.mxu0 0.0
        %1275 = vmatpush1.msra.mxu0 0.0
        %1276 = vmatprep.subr.mxu0 0.0
        %1277 = vmatpush1.msra.mxu0 0.0
        %1278 = vmatprep.subr.mxu0 0.0
        %1279 = vmatpush1.msra.mxu0 0.0
        %1280 = vmatprep.subr.mxu0 0.0
        %1281 = vmatpush1.msra.mxu0 0.0
        %1282 = vmatprep.subr.mxu0 0.0
        %1283 = vmatpush1.msra.mxu0 0.0
        %1284 = vmatprep.subr.mxu0 0.0
        %1285 = vmatpush1.msra.mxu0 0.0
        %1286 = vmatprep.subr.mxu0 0.0
        %1287 = vmatpush1.msra.mxu0 0.0
        %1288 = vmatprep.subr.mxu0 0.0
        %1289 = vmatpush1.msra.mxu0 0.0
        %1290 = vmatprep.subr.mxu0 0.0
        %1291 = vmatpush1.msra.mxu0 0.0
        %1292 = vmatprep.subr.mxu0 0.0
        %1293 = vmatpush1.msra.mxu0 0.0
        %1294 = vmatprep.subr.mxu0 0.0
        %1295 = vmatpush1.msra.mxu0 0.0
        %1296 = vmatprep.mubr.f32.mxu0 0.0
        %v1297 = vand.u32 %v173, 4294901760
        %v1298 = vsub.f32 %v173, %v1297
        %1299 = vmatmul.mubr.f32.gmra.mrb[0].mxu0 %v1298
        %v1300 = vpop.f32.mrb[0].mxu0
        %v1301 = vadd.f32 %v1227, %v1300
        %v1302 = vpop.f32.mrb[0].mxu0
        %1303 = vdwg.mxu0
        %1304 = vmatprep.subr.mxu0 0.0
        %v1305 = vand.u32 %v1077, 4294901760
        %1306 = vmatpush1.msra.mxu0 %v1305
        %1307 = vmatprep.subr.mxu0 0.0
        %1308 = vmatpush1.msra.mxu0 0.0
        %1309 = vmatprep.subr.mxu0 0.0
        %1310 = vmatpush1.msra.mxu0 0.0
        %1311 = vmatprep.subr.mxu0 0.0
        %1312 = vmatpush1.msra.mxu0 0.0
        %1313 = vmatprep.subr.mxu0 0.0
        %1314 = vmatpush1.msra.mxu0 0.0
        %1315 = vmatprep.subr.mxu0 0.0
        %1316 = vmatpush1.msra.mxu0 0.0
        %1317 = vmatprep.subr.mxu0 0.0
        %1318 = vmatpush1.msra.mxu0 0.0
        %1319 = vmatprep.subr.mxu0 0.0
        %1320 = vmatpush1.msra.mxu0 0.0
        %1321 = vmatprep.subr.mxu0 0.0
        %1322 = vmatpush1.msra.mxu0 0.0
        %1323 = vmatprep.subr.mxu0 0.0
        %1324 = vmatpush1.msra.mxu0 0.0
        %1325 = vmatprep.subr.mxu0 0.0
        %1326 = vmatpush1.msra.mxu0 0.0
        %1327 = vmatprep.subr.mxu0 0.0
        %1328 = vmatpush1.msra.mxu0 0.0
        %1329 = vmatprep.subr.mxu0 0.0
        %1330 = vmatpush1.msra.mxu0 0.0
        %1331 = vmatprep.subr.mxu0 0.0
        %1332 = vmatpush1.msra.mxu0 0.0
        %1333 = vmatprep.subr.mxu0 0.0
        %1334 = vmatpush1.msra.mxu0 0.0
        %1335 = vmatprep.subr.mxu0 0.0
        %1336 = vmatpush1.msra.mxu0 0.0
        %1337 = vmatprep.subr.mxu0 0.0
        %1338 = vmatpush1.msra.mxu0 0.0
        %1339 = vmatprep.subr.mxu0 0.0
        %1340 = vmatpush1.msra.mxu0 0.0
        %1341 = vmatprep.subr.mxu0 0.0
        %1342 = vmatpush1.msra.mxu0 0.0
        %1343 = vmatprep.subr.mxu0 0.0
        %1344 = vmatpush1.msra.mxu0 0.0
        %1345 = vmatprep.subr.mxu0 0.0
        %1346 = vmatpush1.msra.mxu0 0.0
        %1347 = vmatprep.subr.mxu0 0.0
        %1348 = vmatpush1.msra.mxu0 0.0
        %1349 = vmatprep.subr.mxu0 0.0
        %1350 = vmatpush1.msra.mxu0 0.0
        %1351 = vmatprep.subr.mxu0 0.0
        %1352 = vmatpush1.msra.mxu0 0.0
        %1353 = vmatprep.subr.mxu0 0.0
        %1354 = vmatpush1.msra.mxu0 0.0
        %1355 = vmatprep.subr.mxu0 0.0
        %1356 = vmatpush1.msra.mxu0 0.0
        %1357 = vmatprep.subr.mxu0 0.0
        %1358 = vmatpush1.msra.mxu0 0.0
        %1359 = vmatprep.subr.mxu0 0.0
        %1360 = vmatpush1.msra.mxu0 0.0
        %1361 = vmatprep.subr.mxu0 0.0
        %1362 = vmatpush1.msra.mxu0 0.0
        %1363 = vmatprep.subr.mxu0 0.0
        %1364 = vmatpush1.msra.mxu0 0.0
        %1365 = vmatprep.subr.mxu0 0.0
        %1366 = vmatpush1.msra.mxu0 0.0
        %1367 = vmatprep.subr.mxu0 0.0
        %1368 = vmatpush1.msra.mxu0 0.0
        %1369 = vmatprep.mubr.f32.mxu0 0.0
        %v1370 = vand.u32 %v173, 4294901760
        %v1371 = vsub.f32 %v173, %v1370
        %v1372 = vand.u32 %v1371, 4294901760
        %1373 = vmatmul.mubr.f32.gmra.mrb[0].mxu0 %v1372
        %v1374 = vpop.f32.mrb[0].mxu0
        %v1375 = vadd.f32 %v1301, %v1374
        %v1376 = vpop.f32.mrb[0].mxu0
        %1377 = vdwg.mxu0
        %1378 = vmatprep.subr.mxu0 0.0
        %v1379 = vand.u32 %v1077, 4294901760
        %v1380 = vsub.f32 %v1077, %v1379
        %v1381 = vand.u32 %v1380, 4294901760
        %1382 = vmatpush1.msra.mxu0 %v1381
        %1383 = vmatprep.subr.mxu0 0.0
        %1384 = vmatpush1.msra.mxu0 0.0
        %1385 = vmatprep.subr.mxu0 0.0
        %1386 = vmatpush1.msra.mxu0 0.0
        %1387 = vmatprep.subr.mxu0 0.0
        %1388 = vmatpush1.msra.mxu0 0.0
        %1389 = vmatprep.subr.mxu0 0.0
        %1390 = vmatpush1.msra.mxu0 0.0
        %1391 = vmatprep.subr.mxu0 0.0
        %1392 = vmatpush1.msra.mxu0 0.0
        %1393 = vmatprep.subr.mxu0 0.0
        %1394 = vmatpush1.msra.mxu0 0.0
        %1395 = vmatprep.subr.mxu0 0.0
        %1396 = vmatpush1.msra.mxu0 0.0
        %1397 = vmatprep.subr.mxu0 0.0
        %1398 = vmatpush1.msra.mxu0 0.0
        %1399 = vmatprep.subr.mxu0 0.0
        %1400 = vmatpush1.msra.mxu0 0.0
        %1401 = vmatprep.subr.mxu0 0.0
        %1402 = vmatpush1.msra.mxu0 0.0
        %1403 = vmatprep.subr.mxu0 0.0
        %1404 = vmatpush1.msra.mxu0 0.0
        %1405 = vmatprep.subr.mxu0 0.0
        %1406 = vmatpush1.msra.mxu0 0.0
        %1407 = vmatprep.subr.mxu0 0.0
        %1408 = vmatpush1.msra.mxu0 0.0
        %1409 = vmatprep.subr.mxu0 0.0
        %1410 = vmatpush1.msra.mxu0 0.0
        %1411 = vmatprep.subr.mxu0 0.0
        %1412 = vmatpush1.msra.mxu0 0.0
        %1413 = vmatprep.subr.mxu0 0.0
        %1414 = vmatpush1.msra.mxu0 0.0
        %1415 = vmatprep.subr.mxu0 0.0
        %1416 = vmatpush1.msra.mxu0 0.0
        %1417 = vmatprep.subr.mxu0 0.0
        %1418 = vmatpush1.msra.mxu0 0.0
        %1419 = vmatprep.subr.mxu0 0.0
        %1420 = vmatpush1.msra.mxu0 0.0
        %1421 = vmatprep.subr.mxu0 0.0
        %1422 = vmatpush1.msra.mxu0 0.0
        %1423 = vmatprep.subr.mxu0 0.0
        %1424 = vmatpush1.msra.mxu0 0.0
        %1425 = vmatprep.subr.mxu0 0.0
        %1426 = vmatpush1.msra.mxu0 0.0
        %1427 = vmatprep.subr.mxu0 0.0
        %1428 = vmatpush1.msra.mxu0 0.0
        %1429 = vmatprep.subr.mxu0 0.0
        %1430 = vmatpush1.msra.mxu0 0.0
        %1431 = vmatprep.subr.mxu0 0.0
        %1432 = vmatpush1.msra.mxu0 0.0
        %1433 = vmatprep.subr.mxu0 0.0
        %1434 = vmatpush1.msra.mxu0 0.0
        %1435 = vmatprep.subr.mxu0 0.0
        %1436 = vmatpush1.msra.mxu0 0.0
        %1437 = vmatprep.subr.mxu0 0.0
        %1438 = vmatpush1.msra.mxu0 0.0
        %1439 = vmatprep.subr.mxu0 0.0
        %1440 = vmatpush1.msra.mxu0 0.0
        %1441 = vmatprep.subr.mxu0 0.0
        %1442 = vmatpush1.msra.mxu0 0.0
        %1443 = vmatprep.subr.mxu0 0.0
        %1444 = vmatpush1.msra.mxu0 0.0
        %1445 = vmatprep.mubr.f32.mxu0 0.0
        %v1446 = vand.u32 %v173, 4294901760
        %1447 = vmatmul.mubr.f32.gmra.mrb[0].mxu0 %v1446
        %v1448 = vpop.f32.mrb[0].mxu0
        %v1449 = vadd.f32 %v1375, %v1448
        %v1450 = vpop.f32.mrb[0].mxu0
        %1451 = vdwg.mxu0
        %1452 = vmatprep.subr.mxu0 0.0
        %v1453 = vand.u32 %v1077, 4294901760
        %1454 = vmatpush1.msra.mxu0 %v1453
        %1455 = vmatprep.subr.mxu0 0.0
        %1456 = vmatpush1.msra.mxu0 0.0
        %1457 = vmatprep.subr.mxu0 0.0
        %1458 = vmatpush1.msra.mxu0 0.0
        %1459 = vmatprep.subr.mxu0 0.0
        %1460 = vmatpush1.msra.mxu0 0.0
        %1461 = vmatprep.subr.mxu0 0.0
        %1462 = vmatpush1.msra.mxu0 0.0
        %1463 = vmatprep.subr.mxu0 0.0
        %1464 = vmatpush1.msra.mxu0 0.0
        %1465 = vmatprep.subr.mxu0 0.0
        %1466 = vmatpush1.msra.mxu0 0.0
        %1467 = vmatprep.subr.mxu0 0.0
        %1468 = vmatpush1.msra.mxu0 0.0
        %1469 = vmatprep.subr.mxu0 0.0
        %1470 = vmatpush1.msra.mxu0 0.0
        %1471 = vmatprep.subr.mxu0 0.0
        %1472 = vmatpush1.msra.mxu0 0.0
        %1473 = vmatprep.subr.mxu0 0.0
        %1474 = vmatpush1.msra.mxu0 0.0
        %1475 = vmatprep.subr.mxu0 0.0
        %1476 = vmatpush1.msra.mxu0 0.0
        %1477 = vmatprep.subr.mxu0 0.0
        %1478 = vmatpush1.msra.mxu0 0.0
        %1479 = vmatprep.subr.mxu0 0.0
        %1480 = vmatpush1.msra.mxu0 0.0
        %1481 = vmatprep.subr.mxu0 0.0
        %1482 = vmatpush1.msra.mxu0 0.0
        %1483 = vmatprep.subr.mxu0 0.0
        %1484 = vmatpush1.msra.mxu0 0.0
        %1485 = vmatprep.subr.mxu0 0.0
        %1486 = vmatpush1.msra.mxu0 0.0
        %1487 = vmatprep.subr.mxu0 0.0
        %1488 = vmatpush1.msra.mxu0 0.0
        %1489 = vmatprep.subr.mxu0 0.0
        %1490 = vmatpush1.msra.mxu0 0.0
        %1491 = vmatprep.subr.mxu0 0.0
        %1492 = vmatpush1.msra.mxu0 0.0
        %1493 = vmatprep.subr.mxu0 0.0
        %1494 = vmatpush1.msra.mxu0 0.0
        %1495 = vmatprep.subr.mxu0 0.0
        %1496 = vmatpush1.msra.mxu0 0.0
        %1497 = vmatprep.subr.mxu0 0.0
        %1498 = vmatpush1.msra.mxu0 0.0
        %1499 = vmatprep.subr.mxu0 0.0
        %1500 = vmatpush1.msra.mxu0 0.0
        %1501 = vmatprep.subr.mxu0 0.0
        %1502 = vmatpush1.msra.mxu0 0.0
        %1503 = vmatprep.subr.mxu0 0.0
        %1504 = vmatpush1.msra.mxu0 0.0
        %1505 = vmatprep.subr.mxu0 0.0
        %1506 = vmatpush1.msra.mxu0 0.0
        %1507 = vmatprep.subr.mxu0 0.0
        %1508 = vmatpush1.msra.mxu0 0.0
        %1509 = vmatprep.subr.mxu0 0.0
        %1510 = vmatpush1.msra.mxu0 0.0
        %1511 = vmatprep.subr.mxu0 0.0
        %1512 = vmatpush1.msra.mxu0 0.0
        %1513 = vmatprep.subr.mxu0 0.0
        %1514 = vmatpush1.msra.mxu0 0.0
        %1515 = vmatprep.subr.mxu0 0.0
        %1516 = vmatpush1.msra.mxu0 0.0
        %1517 = vmatprep.mubr.f32.mxu0 0.0
        %v1518 = vand.u32 %v173, 4294901760
        %1519 = vmatmul.mubr.f32.gmra.mrb[0].mxu0 %v1518
        %v1520 = vpop.f32.mrb[0].mxu0
        %v1521 = vadd.f32 %v1449, %v1520
        %v1522 = vpop.f32.mrb[0].mxu0
        %1523 = vdwg.mxu0
        %v1524 = vmul.f32 %v1521, %v170
        %v1525 = vrsqrt.pop %v1524
        %v1526 = vmul.f32 %v1524, %v1525
        %vm1527 = vcmp.eq.f32.partialorder %v1524, inf
        %v1528 = vsel %vm1527, %v1524, %v1526
        %vm1529 = vcmp.eq.f32.partialorder %v1524, 0.0
        %v1530 = vand.u32 %v1524, 2147483648
        %v1531 = vsel %vm1529, %v1530, %v1528
        %v1532 = vadd.f32 %v1531, 1e-05
        %v1533 = vrcp.pop %v1532
        %v1535 = vsel %vm626, %v1533, 0
        %1537 = vmatprep.subr.mxu0 0.0
        %v1538 = vand.u32 %v1535, 4294901760
        %1539 = vmatpush1.msra.mxu0 %v1538
        %1540 = vmatprep.subr.mxu0 0.0
        %1541 = vmatpush1.msra.mxu0 0.0
        %1542 = vmatprep.subr.mxu0 0.0
        %1543 = vmatpush1.msra.mxu0 0.0
        %1544 = vmatprep.subr.mxu0 0.0
        %1545 = vmatpush1.msra.mxu0 0.0
        %1546 = vmatprep.subr.mxu0 0.0
        %1547 = vmatpush1.msra.mxu0 0.0
        %1548 = vmatprep.subr.mxu0 0.0
        %1549 = vmatpush1.msra.mxu0 0.0
        %1550 = vmatprep.subr.mxu0 0.0
        %1551 = vmatpush1.msra.mxu0 0.0
        %1552 = vmatprep.subr.mxu0 0.0
        %1553 = vmatpush1.msra.mxu0 0.0
        %1554 = vmatprep.subr.mxu0 0.0
        %1555 = vmatpush1.msra.mxu0 0.0
        %1556 = vmatprep.subr.mxu0 0.0
        %1557 = vmatpush1.msra.mxu0 0.0
        %1558 = vmatprep.subr.mxu0 0.0
        %1559 = vmatpush1.msra.mxu0 0.0
        %1560 = vmatprep.subr.mxu0 0.0
        %1561 = vmatpush1.msra.mxu0 0.0
        %1562 = vmatprep.subr.mxu0 0.0
        %1563 = vmatpush1.msra.mxu0 0.0
        %1564 = vmatprep.subr.mxu0 0.0
        %1565 = vmatpush1.msra.mxu0 0.0
        %1566 = vmatprep.subr.mxu0 0.0
        %1567 = vmatpush1.msra.mxu0 0.0
        %1568 = vmatprep.subr.mxu0 0.0
        %1569 = vmatpush1.msra.mxu0 0.0
        %1570 = vmatprep.subr.mxu0 0.0
        %1571 = vmatpush1.msra.mxu0 0.0
        %1572 = vmatprep.subr.mxu0 0.0
        %1573 = vmatpush1.msra.mxu0 0.0
        %1574 = vmatprep.subr.mxu0 0.0
        %1575 = vmatpush1.msra.mxu0 0.0
        %1576 = vmatprep.subr.mxu0 0.0
        %1577 = vmatpush1.msra.mxu0 0.0
        %1578 = vmatprep.subr.mxu0 0.0
        %1579 = vmatpush1.msra.mxu0 0.0
        %1580 = vmatprep.subr.mxu0 0.0
        %1581 = vmatpush1.msra.mxu0 0.0
        %1582 = vmatprep.subr.mxu0 0.0
        %1583 = vmatpush1.msra.mxu0 0.0
        %1584 = vmatprep.subr.mxu0 0.0
        %1585 = vmatpush1.msra.mxu0 0.0
        %1586 = vmatprep.subr.mxu0 0.0
        %1587 = vmatpush1.msra.mxu0 0.0
        %1588 = vmatprep.subr.mxu0 0.0
        %1589 = vmatpush1.msra.mxu0 0.0
        %1590 = vmatprep.subr.mxu0 0.0
        %1591 = vmatpush1.msra.mxu0 0.0
        %1592 = vmatprep.subr.mxu0 0.0
        %1593 = vmatpush1.msra.mxu0 0.0
        %1594 = vmatprep.subr.mxu0 0.0
        %1595 = vmatpush1.msra.mxu0 0.0
        %1596 = vmatprep.subr.mxu0 0.0
        %1597 = vmatpush1.msra.mxu0 0.0
        %1598 = vmatprep.subr.mxu0 0.0
        %1599 = vmatpush1.msra.mxu0 0.0
        %1600 = vmatprep.subr.mxu0 0.0
        %1601 = vmatpush1.msra.mxu0 0.0
        %1602 = vmatprep.mubr.f32.mxu0 0.0
        %v1603 = vand.u32 %v624, 4294901760
        %v1604 = vsub.f32 %v624, %v1603
        %v1605 = vand.u32 %v1604, 4294901760
        %v1606 = vsub.f32 %v1604, %v1605
        %v1607 = vand.u32 %v1606, 4294901760
        %1608 = vmatmul.mubr.f32.gmra.mrb[0].mxu0 %v1607
        %v1609 = vpop.f32.mrb[0].mxu0
        %v1610 = vadd.f32 0.0, %v1609
        %v1611 = vpop.f32.mrb[0].mxu0
        %1612 = vdwg.mxu0
        %1613 = vmatprep.subr.mxu0 0.0
        %v1614 = vand.u32 %v1535, 4294901760
        %v1615 = vsub.f32 %v1535, %v1614
        %v1616 = vand.u32 %v1615, 4294901760
        %v1617 = vsub.f32 %v1615, %v1616
        %v1618 = vand.u32 %v1617, 4294901760
        %1619 = vmatpush1.msra.mxu0 %v1618
        %1620 = vmatprep.subr.mxu0 0.0
        %1621 = vmatpush1.msra.mxu0 0.0
        %1622 = vmatprep.subr.mxu0 0.0
        %1623 = vmatpush1.msra.mxu0 0.0
        %1624 = vmatprep.subr.mxu0 0.0
        %1625 = vmatpush1.msra.mxu0 0.0
        %1626 = vmatprep.subr.mxu0 0.0
        %1627 = vmatpush1.msra.mxu0 0.0
        %1628 = vmatprep.subr.mxu0 0.0
        %1629 = vmatpush1.msra.mxu0 0.0
        %1630 = vmatprep.subr.mxu0 0.0
        %1631 = vmatpush1.msra.mxu0 0.0
        %1632 = vmatprep.subr.mxu0 0.0
        %1633 = vmatpush1.msra.mxu0 0.0
        %1634 = vmatprep.subr.mxu0 0.0
        %1635 = vmatpush1.msra.mxu0 0.0
        %1636 = vmatprep.subr.mxu0 0.0
        %1637 = vmatpush1.msra.mxu0 0.0
        %1638 = vmatprep.subr.mxu0 0.0
        %1639 = vmatpush1.msra.mxu0 0.0
        %1640 = vmatprep.subr.mxu0 0.0
        %1641 = vmatpush1.msra.mxu0 0.0
        %1642 = vmatprep.subr.mxu0 0.0
        %1643 = vmatpush1.msra.mxu0 0.0
        %1644 = vmatprep.subr.mxu0 0.0
        %1645 = vmatpush1.msra.mxu0 0.0
        %1646 = vmatprep.subr.mxu0 0.0
        %1647 = vmatpush1.msra.mxu0 0.0
        %1648 = vmatprep.subr.mxu0 0.0
        %1649 = vmatpush1.msra.mxu0 0.0
        %1650 = vmatprep.subr.mxu0 0.0
        %1651 = vmatpush1.msra.mxu0 0.0
        %1652 = vmatprep.subr.mxu0 0.0
        %1653 = vmatpush1.msra.mxu0 0.0
        %1654 = vmatprep.subr.mxu0 0.0
        %1655 = vmatpush1.msra.mxu0 0.0
        %1656 = vmatprep.subr.mxu0 0.0
        %1657 = vmatpush1.msra.mxu0 0.0
        %1658 = vmatprep.subr.mxu0 0.0
        %1659 = vmatpush1.msra.mxu0 0.0
        %1660 = vmatprep.subr.mxu0 0.0
        %1661 = vmatpush1.msra.mxu0 0.0
        %1662 = vmatprep.subr.mxu0 0.0
        %1663 = vmatpush1.msra.mxu0 0.0
        %1664 = vmatprep.subr.mxu0 0.0
        %1665 = vmatpush1.msra.mxu0 0.0
        %1666 = vmatprep.subr.mxu0 0.0
        %1667 = vmatpush1.msra.mxu0 0.0
        %1668 = vmatprep.subr.mxu0 0.0
        %1669 = vmatpush1.msra.mxu0 0.0
        %1670 = vmatprep.subr.mxu0 0.0
        %1671 = vmatpush1.msra.mxu0 0.0
        %1672 = vmatprep.subr.mxu0 0.0
        %1673 = vmatpush1.msra.mxu0 0.0
        %1674 = vmatprep.subr.mxu0 0.0
        %1675 = vmatpush1.msra.mxu0 0.0
        %1676 = vmatprep.subr.mxu0 0.0
        %1677 = vmatpush1.msra.mxu0 0.0
        %1678 = vmatprep.subr.mxu0 0.0
        %1679 = vmatpush1.msra.mxu0 0.0
        %1680 = vmatprep.subr.mxu0 0.0
        %1681 = vmatpush1.msra.mxu0 0.0
        %1682 = vmatprep.mubr.f32.mxu0 0.0
        %v1683 = vand.u32 %v624, 4294901760
        %1684 = vmatmul.mubr.f32.gmra.mrb[0].mxu0 %v1683
        %v1685 = vpop.f32.mrb[0].mxu0
        %v1686 = vadd.f32 %v1610, %v1685
        %v1687 = vpop.f32.mrb[0].mxu0
        %1688 = vdwg.mxu0
        %1689 = vmatprep.subr.mxu0 0.0
        %v1690 = vand.u32 %v1535, 4294901760
        %v1691 = vsub.f32 %v1535, %v1690
        %1692 = vmatpush1.msra.mxu0 %v1691
        %1693 = vmatprep.subr.mxu0 0.0
        %1694 = vmatpush1.msra.mxu0 0.0
        %1695 = vmatprep.subr.mxu0 0.0
        %1696 = vmatpush1.msra.mxu0 0.0
        %1697 = vmatprep.subr.mxu0 0.0
        %1698 = vmatpush1.msra.mxu0 0.0
        %1699 = vmatprep.subr.mxu0 0.0
        %1700 = vmatpush1.msra.mxu0 0.0
        %1701 = vmatprep.subr.mxu0 0.0
        %1702 = vmatpush1.msra.mxu0 0.0
        %1703 = vmatprep.subr.mxu0 0.0
        %1704 = vmatpush1.msra.mxu0 0.0
        %1705 = vmatprep.subr.mxu0 0.0
        %1706 = vmatpush1.msra.mxu0 0.0
        %1707 = vmatprep.subr.mxu0 0.0
        %1708 = vmatpush1.msra.mxu0 0.0
        %1709 = vmatprep.subr.mxu0 0.0
        %1710 = vmatpush1.msra.mxu0 0.0
        %1711 = vmatprep.subr.mxu0 0.0
        %1712 = vmatpush1.msra.mxu0 0.0
        %1713 = vmatprep.subr.mxu0 0.0
        %1714 = vmatpush1.msra.mxu0 0.0
        %1715 = vmatprep.subr.mxu0 0.0
        %1716 = vmatpush1.msra.mxu0 0.0
        %1717 = vmatprep.subr.mxu0 0.0
        %1718 = vmatpush1.msra.mxu0 0.0
        %1719 = vmatprep.subr.mxu0 0.0
        %1720 = vmatpush1.msra.mxu0 0.0
        %1721 = vmatprep.subr.mxu0 0.0
        %1722 = vmatpush1.msra.mxu0 0.0
        %1723 = vmatprep.subr.mxu0 0.0
        %1724 = vmatpush1.msra.mxu0 0.0
        %1725 = vmatprep.subr.mxu0 0.0
        %1726 = vmatpush1.msra.mxu0 0.0
        %1727 = vmatprep.subr.mxu0 0.0
        %1728 = vmatpush1.msra.mxu0 0.0
        %1729 = vmatprep.subr.mxu0 0.0
        %1730 = vmatpush1.msra.mxu0 0.0
        %1731 = vmatprep.subr.mxu0 0.0
        %1732 = vmatpush1.msra.mxu0 0.0
        %1733 = vmatprep.subr.mxu0 0.0
        %1734 = vmatpush1.msra.mxu0 0.0
        %1735 = vmatprep.subr.mxu0 0.0
        %1736 = vmatpush1.msra.mxu0 0.0
        %1737 = vmatprep.subr.mxu0 0.0
        %1738 = vmatpush1.msra.mxu0 0.0
        %1739 = vmatprep.subr.mxu0 0.0
        %1740 = vmatpush1.msra.mxu0 0.0
        %1741 = vmatprep.subr.mxu0 0.0
        %1742 = vmatpush1.msra.mxu0 0.0
        %1743 = vmatprep.subr.mxu0 0.0
        %1744 = vmatpush1.msra.mxu0 0.0
        %1745 = vmatprep.subr.mxu0 0.0
        %1746 = vmatpush1.msra.mxu0 0.0
        %1747 = vmatprep.subr.mxu0 0.0
        %1748 = vmatpush1.msra.mxu0 0.0
        %1749 = vmatprep.subr.mxu0 0.0
        %1750 = vmatpush1.msra.mxu0 0.0
        %1751 = vmatprep.subr.mxu0 0.0
        %1752 = vmatpush1.msra.mxu0 0.0
        %1753 = vmatprep.subr.mxu0 0.0
        %1754 = vmatpush1.msra.mxu0 0.0
        %1755 = vmatprep.mubr.f32.mxu0 0.0
        %v1756 = vand.u32 %v624, 4294901760
        %v1757 = vsub.f32 %v624, %v1756
        %1758 = vmatmul.mubr.f32.gmra.mrb[0].mxu0 %v1757
        %v1759 = vpop.f32.mrb[0].mxu0
        %v1760 = vadd.f32 %v1686, %v1759
        %v1761 = vpop.f32.mrb[0].mxu0
        %1762 = vdwg.mxu0
        %1763 = vmatprep.subr.mxu0 0.0
        %v1764 = vand.u32 %v1535, 4294901760
        %1765 = vmatpush1.msra.mxu0 %v1764
        %1766 = vmatprep.subr.mxu0 0.0
        %1767 = vmatpush1.msra.mxu0 0.0
        %1768 = vmatprep.subr.mxu0 0.0
        %1769 = vmatpush1.msra.mxu0 0.0
        %1770 = vmatprep.subr.mxu0 0.0
        %1771 = vmatpush1.msra.mxu0 0.0
        %1772 = vmatprep.subr.mxu0 0.0
        %1773 = vmatpush1.msra.mxu0 0.0
        %1774 = vmatprep.subr.mxu0 0.0
        %1775 = vmatpush1.msra.mxu0 0.0
        %1776 = vmatprep.subr.mxu0 0.0
        %1777 = vmatpush1.msra.mxu0 0.0
        %1778 = vmatprep.subr.mxu0 0.0
        %1779 = vmatpush1.msra.mxu0 0.0
        %1780 = vmatprep.subr.mxu0 0.0
        %1781 = vmatpush1.msra.mxu0 0.0
        %1782 = vmatprep.subr.mxu0 0.0
        %1783 = vmatpush1.msra.mxu0 0.0
        %1784 = vmatprep.subr.mxu0 0.0
        %1785 = vmatpush1.msra.mxu0 0.0
        %1786 = vmatprep.subr.mxu0 0.0
        %1787 = vmatpush1.msra.mxu0 0.0
        %1788 = vmatprep.subr.mxu0 0.0
        %1789 = vmatpush1.msra.mxu0 0.0
        %1790 = vmatprep.subr.mxu0 0.0
        %1791 = vmatpush1.msra.mxu0 0.0
        %1792 = vmatprep.subr.mxu0 0.0
        %1793 = vmatpush1.msra.mxu0 0.0
        %1794 = vmatprep.subr.mxu0 0.0
        %1795 = vmatpush1.msra.mxu0 0.0
        %1796 = vmatprep.subr.mxu0 0.0
        %1797 = vmatpush1.msra.mxu0 0.0
        %1798 = vmatprep.subr.mxu0 0.0
        %1799 = vmatpush1.msra.mxu0 0.0
        %1800 = vmatprep.subr.mxu0 0.0
        %1801 = vmatpush1.msra.mxu0 0.0
        %1802 = vmatprep.subr.mxu0 0.0
        %1803 = vmatpush1.msra.mxu0 0.0
        %1804 = vmatprep.subr.mxu0 0.0
        %1805 = vmatpush1.msra.mxu0 0.0
        %1806 = vmatprep.subr.mxu0 0.0
        %1807 = vmatpush1.msra.mxu0 0.0
        %1808 = vmatprep.subr.mxu0 0.0
        %1809 = vmatpush1.msra.mxu0 0.0
        %1810 = vmatprep.subr.mxu0 0.0
        %1811 = vmatpush1.msra.mxu0 0.0
        %1812 = vmatprep.subr.mxu0 0.0
        %1813 = vmatpush1.msra.mxu0 0.0
        %1814 = vmatprep.subr.mxu0 0.0
        %1815 = vmatpush1.msra.mxu0 0.0
        %1816 = vmatprep.subr.mxu0 0.0
        %1817 = vmatpush1.msra.mxu0 0.0
        %1818 = vmatprep.subr.mxu0 0.0
        %1819 = vmatpush1.msra.mxu0 0.0
        %1820 = vmatprep.subr.mxu0 0.0
        %1821 = vmatpush1.msra.mxu0 0.0
        %1822 = vmatprep.subr.mxu0 0.0
        %1823 = vmatpush1.msra.mxu0 0.0
        %1824 = vmatprep.subr.mxu0 0.0
        %1825 = vmatpush1.msra.mxu0 0.0
        %1826 = vmatprep.subr.mxu0 0.0
        %1827 = vmatpush1.msra.mxu0 0.0
        %1828 = vmatprep.mubr.f32.mxu0 0.0
        %v1829 = vand.u32 %v624, 4294901760
        %v1830 = vsub.f32 %v624, %v1829
        %v1831 = vand.u32 %v1830, 4294901760
        %1832 = vmatmul.mubr.f32.gmra.mrb[0].mxu0 %v1831
        %v1833 = vpop.f32.mrb[0].mxu0
        %v1834 = vadd.f32 %v1760, %v1833
        %v1835 = vpop.f32.mrb[0].mxu0
        %1836 = vdwg.mxu0
        %1837 = vmatprep.subr.mxu0 0.0
        %v1838 = vand.u32 %v1535, 4294901760
        %v1839 = vsub.f32 %v1535, %v1838
        %v1840 = vand.u32 %v1839, 4294901760
        %1841 = vmatpush1.msra.mxu0 %v1840
        %1842 = vmatprep.subr.mxu0 0.0
        %1843 = vmatpush1.msra.mxu0 0.0
        %1844 = vmatprep.subr.mxu0 0.0
        %1845 = vmatpush1.msra.mxu0 0.0
        %1846 = vmatprep.subr.mxu0 0.0
        %1847 = vmatpush1.msra.mxu0 0.0
        %1848 = vmatprep.subr.mxu0 0.0
        %1849 = vmatpush1.msra.mxu0 0.0
        %1850 = vmatprep.subr.mxu0 0.0
        %1851 = vmatpush1.msra.mxu0 0.0
        %1852 = vmatprep.subr.mxu0 0.0
        %1853 = vmatpush1.msra.mxu0 0.0
        %1854 = vmatprep.subr.mxu0 0.0
        %1855 = vmatpush1.msra.mxu0 0.0
        %1856 = vmatprep.subr.mxu0 0.0
        %1857 = vmatpush1.msra.mxu0 0.0
        %1858 = vmatprep.subr.mxu0 0.0
        %1859 = vmatpush1.msra.mxu0 0.0
        %1860 = vmatprep.subr.mxu0 0.0
        %1861 = vmatpush1.msra.mxu0 0.0
        %1862 = vmatprep.subr.mxu0 0.0
        %1863 = vmatpush1.msra.mxu0 0.0
        %1864 = vmatprep.subr.mxu0 0.0
        %1865 = vmatpush1.msra.mxu0 0.0
        %1866 = vmatprep.subr.mxu0 0.0
        %1867 = vmatpush1.msra.mxu0 0.0
        %1868 = vmatprep.subr.mxu0 0.0
        %1869 = vmatpush1.msra.mxu0 0.0
        %1870 = vmatprep.subr.mxu0 0.0
        %1871 = vmatpush1.msra.mxu0 0.0
        %1872 = vmatprep.subr.mxu0 0.0
        %1873 = vmatpush1.msra.mxu0 0.0
        %1874 = vmatprep.subr.mxu0 0.0
        %1875 = vmatpush1.msra.mxu0 0.0
        %1876 = vmatprep.subr.mxu0 0.0
        %1877 = vmatpush1.msra.mxu0 0.0
        %1878 = vmatprep.subr.mxu0 0.0
        %1879 = vmatpush1.msra.mxu0 0.0
        %1880 = vmatprep.subr.mxu0 0.0
        %1881 = vmatpush1.msra.mxu0 0.0
        %1882 = vmatprep.subr.mxu0 0.0
        %1883 = vmatpush1.msra.mxu0 0.0
        %1884 = vmatprep.subr.mxu0 0.0
        %1885 = vmatpush1.msra.mxu0 0.0
        %1886 = vmatprep.subr.mxu0 0.0
        %1887 = vmatpush1.msra.mxu0 0.0
        %1888 = vmatprep.subr.mxu0 0.0
        %1889 = vmatpush1.msra.mxu0 0.0
        %1890 = vmatprep.subr.mxu0 0.0
        %1891 = vmatpush1.msra.mxu0 0.0
        %1892 = vmatprep.subr.mxu0 0.0
        %1893 = vmatpush1.msra.mxu0 0.0
        %1894 = vmatprep.subr.mxu0 0.0
        %1895 = vmatpush1.msra.mxu0 0.0
        %1896 = vmatprep.subr.mxu0 0.0
        %1897 = vmatpush1.msra.mxu0 0.0
        %1898 = vmatprep.subr.mxu0 0.0
        %1899 = vmatpush1.msra.mxu0 0.0
        %1900 = vmatprep.subr.mxu0 0.0
        %1901 = vmatpush1.msra.mxu0 0.0
        %1902 = vmatprep.subr.mxu0 0.0
        %1903 = vmatpush1.msra.mxu0 0.0
        %1904 = vmatprep.mubr.f32.mxu0 0.0
        %v1905 = vand.u32 %v624, 4294901760
        %1906 = vmatmul.mubr.f32.gmra.mrb[0].mxu0 %v1905
        %v1907 = vpop.f32.mrb[0].mxu0
        %v1908 = vadd.f32 %v1834, %v1907
        %v1909 = vpop.f32.mrb[0].mxu0
        %1910 = vdwg.mxu0
        %1911 = vmatprep.subr.mxu0 0.0
        %v1912 = vand.u32 %v1535, 4294901760
        %1913 = vmatpush1.msra.mxu0 %v1912
        %1914 = vmatprep.subr.mxu0 0.0
        %1915 = vmatpush1.msra.mxu0 0.0
        %1916 = vmatprep.subr.mxu0 0.0
        %1917 = vmatpush1.msra.mxu0 0.0
        %1918 = vmatprep.subr.mxu0 0.0
        %1919 = vmatpush1.msra.mxu0 0.0
        %1920 = vmatprep.subr.mxu0 0.0
        %1921 = vmatpush1.msra.mxu0 0.0
        %1922 = vmatprep.subr.mxu0 0.0
        %1923 = vmatpush1.msra.mxu0 0.0
        %1924 = vmatprep.subr.mxu0 0.0
        %1925 = vmatpush1.msra.mxu0 0.0
        %1926 = vmatprep.subr.mxu0 0.0
        %1927 = vmatpush1.msra.mxu0 0.0
        %1928 = vmatprep.subr.mxu0 0.0
        %1929 = vmatpush1.msra.mxu0 0.0
        %1930 = vmatprep.subr.mxu0 0.0
        %1931 = vmatpush1.msra.mxu0 0.0
        %1932 = vmatprep.subr.mxu0 0.0
        %1933 = vmatpush1.msra.mxu0 0.0
        %1934 = vmatprep.subr.mxu0 0.0
        %1935 = vmatpush1.msra.mxu0 0.0
        %1936 = vmatprep.subr.mxu0 0.0
        %1937 = vmatpush1.msra.mxu0 0.0
        %1938 = vmatprep.subr.mxu0 0.0
        %1939 = vmatpush1.msra.mxu0 0.0
        %1940 = vmatprep.subr.mxu0 0.0
        %1941 = vmatpush1.msra.mxu0 0.0
        %1942 = vmatprep.subr.mxu0 0.0
        %1943 = vmatpush1.msra.mxu0 0.0
        %1944 = vmatprep.subr.mxu0 0.0
        %1945 = vmatpush1.msra.mxu0 0.0
        %1946 = vmatprep.subr.mxu0 0.0
        %1947 = vmatpush1.msra.mxu0 0.0
        %1948 = vmatprep.subr.mxu0 0.0
        %1949 = vmatpush1.msra.mxu0 0.0
        %1950 = vmatprep.subr.mxu0 0.0
        %1951 = vmatpush1.msra.mxu0 0.0
        %1952 = vmatprep.subr.mxu0 0.0
        %1953 = vmatpush1.msra.mxu0 0.0
        %1954 = vmatprep.subr.mxu0 0.0
        %1955 = vmatpush1.msra.mxu0 0.0
        %1956 = vmatprep.subr.mxu0 0.0
        %1957 = vmatpush1.msra.mxu0 0.0
        %1958 = vmatprep.subr.mxu0 0.0
        %1959 = vmatpush1.msra.mxu0 0.0
        %1960 = vmatprep.subr.mxu0 0.0
        %1961 = vmatpush1.msra.mxu0 0.0
        %1962 = vmatprep.subr.mxu0 0.0
        %1963 = vmatpush1.msra.mxu0 0.0
        %1964 = vmatprep.subr.mxu0 0.0
        %1965 = vmatpush1.msra.mxu0 0.0
        %1966 = vmatprep.subr.mxu0 0.0
        %1967 = vmatpush1.msra.mxu0 0.0
        %1968 = vmatprep.subr.mxu0 0.0
        %1969 = vmatpush1.msra.mxu0 0.0
        %1970 = vmatprep.subr.mxu0 0.0
        %1971 = vmatpush1.msra.mxu0 0.0
        %1972 = vmatprep.subr.mxu0 0.0
        %1973 = vmatpush1.msra.mxu0 0.0
        %1974 = vmatprep.subr.mxu0 0.0
        %1975 = vmatpush1.msra.mxu0 0.0
        %1976 = vmatprep.mubr.f32.mxu0 0.0
        %v1977 = vand.u32 %v624, 4294901760
        %1978 = vmatmul.mubr.f32.gmra.mrb[0].mxu0 %v1977
        %v1979 = vpop.f32.mrb[0].mxu0
        %v1980 = vadd.f32 %v1908, %v1979
        %v1981 = vpop.f32.mrb[0].mxu0
        %1982 = vdwg.mxu0
        %v1983 = vmul.f32 %v1076, %v1980
        %1984 = vst [vmem:[%s149] sm:$0xff] %v1983
        %s1985 = sand.u32 %s68, 1
        %s1986 = scalar_lea.sflag [#allocation4], %s1985
        %s1987 = sand.u32 %s68, 1
        %s1988 = smul.addr %s1987, 8
        %s1989 = scalar_lea.vmem [#allocation5], %s1988
        // Predicated region
        $region29: #{tpu_custom_call.1} parent=23 // pred_check
          %p1990 = pneg %p78
        $region30: #{tpu_custom_call.1} parent=23 // pred_check_branch
          %1992 = sbr.rel (%p1990) target = $region32
        $region31: #{tpu_custom_call.1} parent=23 // pred_region
          %s1994 = ssub.s32 128, 128
          %1995 = vsyncadd %s1986, %s1994
          %s1996 = smul.addr %s22, 2
          %s1997 = sadd.s32 %s23, %s1996
          %s1998 = smul.addr %s1997, 128
          %s1999 = scalar_lea.hbm %s1, %s1998
          %s2001 = sshll.u32 %s1989, 4
          %s2002 = int_to_ptr.vmem [resolvable:$true] %s2001
          %2004 = dma.vmem_to_hbm [thread:$0]  %s2002, 128, %s1999, %s1986
        $region32: #{tpu_custom_call.1} parent=23 // pred_fallthru
          _
      $region24: #{tpu_custom_call.1} parent=5 // pred_fallthru
        _
      %p2005 = scmp.le.s32.totalorder 2, %s13
      // Predicated region
      $region33: #{tpu_custom_call.1} parent=5 // pred_check
        %p2006 = pneg %p2005
      $region34: #{tpu_custom_call.1} parent=5 // pred_check_branch
        %2008 = sbr.rel (%p2006) target = $region36
      $region35: #{tpu_custom_call.1} parent=5 // pred_region
        %s2009 = ssub.s32 %s13, 2
        // Predicated region
        $region37: #{tpu_custom_call.1} parent=35 // pred_check
          %p2010 = pneg %p84
        $region38: #{tpu_custom_call.1} parent=35 // pred_check_branch
          %2012 = sbr.rel (%p2010) target = $region40
        $region39: #{tpu_custom_call.1} parent=35 // pred_region
          %s2013 = sand.u32 %s69, 1
          %s2014 = scalar_lea.sflag [#allocation4], %s2013
          %s2015 = sand.u32 %s69, 1
          %s2016 = smul.addr %s2015, 8
          %s2017 = scalar_lea.vmem [#allocation5], %s2016
          %2018 = dma.done %s2014, 128
        $region40: #{tpu_custom_call.1} parent=35 // pred_fallthru
          _
      $region36: #{tpu_custom_call.1} parent=5 // pred_fallthru
        _
    $region6: #{tpu_custom_call.1} parent=1 // loop_footer
      %s17 = sadd.s32 1, %s13
    $region7: #{tpu_custom_call.1} parent=1 // loop_footer_branch
      %12 = sbr.rel target = $region3
    $region8: #{tpu_custom_call.1} parent=1 // loop_exit
      _
    %2019 = vsyncpa [#allocation3], 1
    %s2020 = scalar_lea.sflag [#allocation3], 1
    %2021 = vsyncpa %s2020, 1
    %2022 = vsyncpa [#allocation4], 1
    %s2023 = scalar_lea.sflag [#allocation4], 1
    %2024 = vsyncpa %s2023, 1

</llo_original>
